<compile_context>
chip_gen: v7x
topology: tpu7x:2x2x1
jax: 0.10.0
libtpu: 0.0.40
codegen_flags: <defaults>
</compile_context>

<pallas_src>
import functools

import jax
import jax.numpy as jnp
from jax import lax
from jax.experimental import pallas as pl
from jax.experimental.pallas import tpu as pltpu


def attention_kernel(real_p, feat_ref, att2_ref, w_enc_ref, w_full_ref,
                     awe_ref, alpha_ref):
    feat = feat_ref[...]                          # (TB, Pp, F)  bf16
    tb, p, f = feat.shape
    att2 = att2_ref[...]                          # (TB, A) f32  (b_dec + b_enc folded)

    # Encoder projection on the MXU with a real M dimension:
    # (TB*Pp, F) bf16 @ (F, A) bf16 -> f32 accumulate.
    att1 = jnp.dot(feat.reshape(tb * p, f), w_enc_ref[...],
                   preferred_element_type=jnp.float32)
    a = att1.shape[-1]
    att1 = att1.reshape(tb, p, a)                 # (TB, Pp, A) f32

    # relu(att1 + att2.unsqueeze(1)) in f32.
    s = jnp.maximum(att1 + att2[:, None, :], 0.0)

    # Scoring: VPU multiply + lane reduce over A.  b_full is dropped: it is a
    # uniform pre-softmax shift (softmax is shift-invariant) and `att` is
    # never an output.
    w_full_row = w_full_ref[...].reshape(1, 1, a)
    att = jnp.sum(s * w_full_row, axis=-1)        # (TB, Pp)

    if p > real_p:                                # static branch: mask pixel padding
        col = lax.broadcasted_iota(jnp.int32, (tb, p), 1)
        att = jnp.where(col < real_p, att, -jnp.inf)

    # Softmax over the pixel axis (P sits on lanes -> lane-dense everywhere).
    m = jnp.max(att, axis=-1, keepdims=True)
    e = jnp.exp(att - m)
    alpha = e / jnp.sum(e, axis=-1, keepdims=True)
    alpha_ref[...] = alpha                        # (TB, Pp)

    # attention_weighted_encoding: VPU multiply + sublane reduce over P
    # (no per-batch M=1 MXU matmul; padded pixels carry alpha == 0).
    awe_ref[...] = jnp.sum(feat.astype(jnp.float32) * alpha[:, :, None], axis=1)


def _round_up(x, m):
    return ((x + m - 1) // m) * m


def _vmem_capacity_bytes():
    try:
        return int(pltpu.get_tpu_info().vmem_capacity_bytes)
    except Exception:
        return 64 << 20   # conservative (v7x-sized) fallback if query unavailable


def _tile_vmem_bytes(tb, p, f, a):
    """Conservative VMEM estimate for one grid step at batch-tile `tb`."""
    feat_stream = 2 * tb * p * f * 2             # bf16 features, double-buffered
    io_stream = 2 * tb * (a + f + p) * 4         # att2 in + awe/alpha out, double-buffered
    weights = f * a * 2 + a * 4                  # W_enc (bf16) + W_full row, resident
    interm = tb * p * (2 * a + f + 2) * 4        # att1, s, f32 feat copy, att/alpha temps
    return feat_stream + io_stream + weights + interm


def _pick_tb(b_pad, p_pad, f, a, budget, min_steps=4):
    """Largest multiple-of-8 batch tile dividing b_pad that fits `budget`,
    preferring tiles that give >= min_steps grid steps (megacore + pipeline
    overlap).  Falls back to the smallest legal tile -- never the full batch."""
    candidates = sorted({d for d in range(8, b_pad + 1, 8) if b_pad % d == 0}
                        | {b_pad})
    fits = [tb for tb in candidates if _tile_vmem_bytes(tb, p_pad, f, a) <= budget]
    if not fits:
        return candidates[0]
    for steps in (min_steps, 2):
        multi = [tb for tb in fits if b_pad // tb >= steps]
        if multi:
            return max(multi)
    return max(fits)


def _build_call(real_p, b_pad, p_pad, f, a, tb, vmem_limit, single_buffer_weights):
    # Single-buffer the grid-constant weight blocks to save VMEM (v7x 64 MiB).
    wkw = {"pipeline_mode": pl.Buffered(1)} if single_buffer_weights else {}
    grid = (b_pad // tb,)
    return pl.pallas_call(
        functools.partial(attention_kernel, real_p),
        out_shape=(jax.ShapeDtypeStruct((b_pad, f), jnp.float32),
                   jax.ShapeDtypeStruct((b_pad, p_pad), jnp.float32)),
        grid_spec=pltpu.PrefetchScalarGridSpec(
            num_scalar_prefetch=0,
            grid=grid,
            in_specs=[
                pl.BlockSpec((tb, p_pad, f), lambda b: (b, 0, 0)),       # features (bf16)
                pl.BlockSpec((tb, a),        lambda b: (b, 0)),          # decoder proj (f32)
                pl.BlockSpec((f, a),         lambda b: (0, 0), **wkw),   # W_enc (bf16)
                pl.BlockSpec((1, a),         lambda b: (0, 0), **wkw),   # W_full row (f32)
            ],
            out_specs=[
                pl.BlockSpec((tb, f),     lambda b: (b, 0)),             # weighted encoding
                pl.BlockSpec((tb, p_pad), lambda b: (b, 0)),             # alpha (lane-dense)
            ],
        ),
        compiler_params=pltpu.CompilerParams(
            dimension_semantics=("parallel",),
            vmem_limit_bytes=vmem_limit),
    )


def attention_forward(features, hidden, params):
    B, P, F = features.shape
    A = params["w_enc"].shape[1]

    # Hoisted decoder projection (one dense XLA matmul), with b_enc folded in
    # so the kernel does no bias adds at all.
    att2 = (hidden @ params["w_dec"] + params["b_dec"][0]
            + params["b_enc"][0]).astype(jnp.float32)

    w_enc = params["w_enc"].astype(jnp.bfloat16)
    w_full_row = params["w_full"].reshape(1, A).astype(jnp.float32)

    # Pad batch to a multiple of 8 and pixels to a multiple of 16 (bf16 sublane
    # packing) so in-kernel reshapes / blocks stay free relayouts.
    B_pad = _round_up(B, 8)
    P_pad = _round_up(P, 16)
    feat = features.astype(jnp.bfloat16)
    if B_pad != B or P_pad != P:
        feat = jnp.pad(feat, ((0, B_pad - B), (0, P_pad - P), (0, 0)))
    if B_pad != B:
        att2 = jnp.pad(att2, ((0, B_pad - B), (0, 0)))

    vmem_cap = _vmem_capacity_bytes()
    TB = _pick_tb(B_pad, P_pad, F, A, budget=int(vmem_cap * 0.70))
    vmem_limit = int(vmem_cap * 0.85)

    args = (feat, att2, w_enc, w_full_row)
    try:
        awe, alpha = _build_call(P, B_pad, P_pad, F, A, TB, vmem_limit, True)(*args)
    except Exception:
        # Fallback if this Pallas build rejects pipeline_mode=Buffered(1):
        # identical kernel, default double-buffered constant weights.
        awe, alpha = _build_call(P, B_pad, P_pad, F, A, TB, vmem_limit, False)(*args)

    return awe[:B], alpha[:B, :P]


def init_params(key, feature_size, hidden_size, attention_dim):
    """Deterministic init mimicking nn.Linear default (uniform +-1/sqrt(fan_in)).
    Weights stored transposed: (in_features, out_features)."""
    k1, k2, k3, k4, k5, k6 = jax.random.split(key, 6)
    def u(k, shape, fan_in):
        bound = 1.0 / jnp.sqrt(fan_in)
        return jax.random.uniform(k, shape, jnp.float32, -bound, bound)
    return {
        "w_enc":  u(k1, (feature_size, attention_dim), feature_size),
        "b_enc":  u(k2, (1, attention_dim),            feature_size),
        "w_dec":  u(k3, (hidden_size, attention_dim),  hidden_size),
        "b_dec":  u(k4, (1, attention_dim),            hidden_size),
        "w_full": u(k5, (attention_dim, 1),            attention_dim),
        "b_full": u(k6, (1, 1),                        attention_dim),
    }


def reference_forward(features, hidden, params):
    att1 = features @ params["w_enc"] + params["b_enc"][0]          # (B,P,A)
    att2 = hidden @ params["w_dec"] + params["b_dec"][0]            # (B,A)
    s = jnp.maximum(att1 + att2[:, None, :], 0.0)
    att = (s @ params["w_full"])[..., 0] + params["b_full"][0, 0]   # (B,P)
    alpha = jax.nn.softmax(att, axis=1)
    awe = jnp.sum(features * alpha[:, :, None], axis=1)
    return awe, alpha


if __name__ == "__main__":
    B, P, F, H, A = 4, 16, 32, 32, 32   # batch, num_pixels, feature, hidden, attn dims

    key = jax.random.PRNGKey(0)
    kf, kh, kp = jax.random.split(key, 3)
    features = jax.random.normal(kf, (B, P, F), jnp.float32)
    hidden = jax.random.normal(kh, (B, H), jnp.float32)
    params = init_params(kp, F, H, A)

    awe, alpha = attention_forward(features, hidden, params)
    jax.block_until_ready((awe, alpha))

    awe_ref, alpha_ref = reference_forward(features, hidden, params)
    assert awe.shape == (B, F) and alpha.shape == (B, P)
    # bf16 feature / W_enc quantization in the MXU projection -> loosened tolerances
    # (accumulation, scoring, softmax and the weighted sum remain f32).
    assert jnp.allclose(alpha, alpha_ref, atol=2e-2, rtol=2e-2)
    assert jnp.allclose(awe, awe_ref, atol=2e-2, rtol=2e-2)

    print("KERNEL_OK")
</pallas_src>

<mosaic_0001>
module attributes {stable_mosaic.version = 11 : i64} {
  func.func @attention_kernel(%arg0: i32, %arg1: memref<8x16x32xbf16, #tpu.memory_space<vmem>>, %arg2: memref<8x32xf32, #tpu.memory_space<vmem>>, %arg3: memref<32x32xbf16, #tpu.memory_space<vmem>>, %arg4: memref<1x32xf32, #tpu.memory_space<vmem>>, %arg5: memref<8x32xf32, #tpu.memory_space<vmem>>, %arg6: memref<8x16xf32, #tpu.memory_space<vmem>>) attributes {dimension_semantics = [#tpu.dimension_semantics<parallel>], iteration_bounds = array<i64: 1>, scalar_prefetch = 0 : i64, scratch_operands = 0 : i64, tpu.core_type = #tpu.core_type<tc>, window_params = [{transform_indices = @transform_0, window_bounds = array<i64: 8, 16, 32>}, {transform_indices = @transform_1, window_bounds = array<i64: 8, 32>}, {pipeline_mode = #tpu.pipeline_mode<synchronous>, transform_indices = @transform_2, window_bounds = array<i64: 32, 32>}, {pipeline_mode = #tpu.pipeline_mode<synchronous>, transform_indices = @transform_3, window_bounds = array<i64: 1, 32>}, {transform_indices = @transform_4, window_bounds = array<i64: 8, 32>}, {transform_indices = @transform_5, window_bounds = array<i64: 8, 16>}]} {
    %c0 = arith.constant 0 : index
    %c0_0 = arith.constant 0 : index
    %c0_1 = arith.constant 0 : index
    %0 = vector.load %arg1[%c0, %c0_0, %c0_1] : memref<8x16x32xbf16, #tpu.memory_space<vmem>>, vector<8x16x32xbf16>
    %c0_2 = arith.constant 0 : index
    %c0_3 = arith.constant 0 : index
    %1 = vector.load %arg2[%c0_2, %c0_3] : memref<8x32xf32, #tpu.memory_space<vmem>>, vector<8x32xf32>
    %2 = vector.shape_cast %0 : vector<8x16x32xbf16> to vector<128x32xbf16>
    %c0_4 = arith.constant 0 : index
    %c0_5 = arith.constant 0 : index
    %3 = vector.load %arg3[%c0_4, %c0_5] : memref<32x32xbf16, #tpu.memory_space<vmem>>, vector<32x32xbf16>
    %cst = arith.constant dense<0.000000e+00> : vector<128x32xf32>
    %4 = tpu.matmul %2, %3, %cst {dimension_numbers = #tpu.dot_dimension_numbers<[1], [0], [0], [1], [0, 0, 1, 1], [], []>} : vector<128x32xbf16>, vector<32x32xbf16>, vector<128x32xf32> -> vector<128x32xf32>
    %5 = vector.shape_cast %4 : vector<128x32xf32> to vector<8x16x32xf32>
    %6 = vector.shape_cast %1 : vector<8x32xf32> to vector<8x1x32xf32>
    %7 = vector.broadcast %6 : vector<8x1x32xf32> to vector<8x16x32xf32>
    %8 = arith.addf %5, %7 : vector<8x16x32xf32>
    %cst_6 = arith.constant 0.000000e+00 : f32
    %9 = vector.broadcast %cst_6 : f32 to vector<8x16x32xf32>
    %10 = arith.maximumf %8, %9 : vector<8x16x32xf32>
    %c0_7 = arith.constant 0 : index
    %c0_8 = arith.constant 0 : index
    %11 = vector.load %arg4[%c0_7, %c0_8] : memref<1x32xf32, #tpu.memory_space<vmem>>, vector<1x32xf32>
    %12 = vector.shape_cast %11 : vector<1x32xf32> to vector<1x1x32xf32>
    %13 = vector.broadcast %12 : vector<1x1x32xf32> to vector<8x16x32xf32>
    %14 = arith.mulf %10, %13 : vector<8x16x32xf32>
    %cst_9 = arith.constant dense<0.000000e+00> : vector<8x16xf32>
    %15 = vector.multi_reduction <add>, %14, %cst_9 [2] : vector<8x16x32xf32> to vector<8x16xf32>
    %cst_10 = arith.constant dense<0xFF800000> : vector<8xf32>
    %16 = vector.multi_reduction <maximumf>, %15, %cst_10 [1] : vector<8x16xf32> to vector<8xf32>
    %17 = vector.shape_cast %16 : vector<8xf32> to vector<8x1xf32>
    %18 = vector.broadcast %17 : vector<8x1xf32> to vector<8x16xf32>
    %19 = arith.subf %15, %18 : vector<8x16xf32>
    %20 = math.exp %19 : vector<8x16xf32>
    %cst_11 = arith.constant dense<0.000000e+00> : vector<8xf32>
    %21 = vector.multi_reduction <add>, %20, %cst_11 [1] : vector<8x16xf32> to vector<8xf32>
    %22 = vector.shape_cast %21 : vector<8xf32> to vector<8x1xf32>
    %23 = vector.broadcast %22 : vector<8x1xf32> to vector<8x16xf32>
    %24 = arith.divf %20, %23 : vector<8x16xf32>
    %c0_12 = arith.constant 0 : index
    %c0_13 = arith.constant 0 : index
    %25 = vector.load %arg6[%c0_12, %c0_13] : memref<8x16xf32, #tpu.memory_space<vmem>>, vector<8x16xf32>
    tpu.vector_store %arg6[%c0_12, %c0_13], %24 {strides = array<i32>} : memref<8x16xf32, #tpu.memory_space<vmem>>, vector<8x16xf32>,
    %26 = arith.extf %0 : vector<8x16x32xbf16> to vector<8x16x32xf32>
    %27 = vector.shape_cast %24 : vector<8x16xf32> to vector<8x16x1xf32>
    %28 = vector.broadcast %27 : vector<8x16x1xf32> to vector<8x16x32xf32>
    %29 = arith.mulf %26, %28 : vector<8x16x32xf32>
    %cst_14 = arith.constant dense<0.000000e+00> : vector<8x32xf32>
    %30 = vector.multi_reduction <add>, %29, %cst_14 [1] : vector<8x16x32xf32> to vector<8x32xf32>
    %c0_15 = arith.constant 0 : index
    %c0_16 = arith.constant 0 : index
    %31 = vector.load %arg5[%c0_15, %c0_16] : memref<8x32xf32, #tpu.memory_space<vmem>>, vector<8x32xf32>
    tpu.vector_store %arg5[%c0_15, %c0_16], %30 {strides = array<i32>} : memref<8x32xf32, #tpu.memory_space<vmem>>, vector<8x32xf32>,
    return
  }
  func.func @transform_0(%arg0: i32) -> (i32, i32, i32) {
    %c0_i32 = arith.constant 0 : i32
    %c0_i32_0 = arith.constant 0 : i32
    %c0_i32_1 = arith.constant 0 : i32
    return %arg0, %c0_i32, %c0_i32_0 : i32, i32, i32
  }
  func.func @transform_1(%arg0: i32) -> (i32, i32) {
    %c0_i32 = arith.constant 0 : i32
    %c0_i32_0 = arith.constant 0 : i32
    return %arg0, %c0_i32 : i32, i32
  }
  func.func @transform_2(%arg0: i32) -> (i32, i32) {
    %c0_i32 = arith.constant 0 : i32
    %c0_i32_0 = arith.constant 0 : i32
    %c0_i32_1 = arith.constant 0 : i32
    return %c0_i32, %c0_i32_0 : i32, i32
  }
  func.func @transform_3(%arg0: i32) -> (i32, i32) {
    %c0_i32 = arith.constant 0 : i32
    %c0_i32_0 = arith.constant 0 : i32
    %c0_i32_1 = arith.constant 0 : i32
    return %c0_i32, %c0_i32_0 : i32, i32
  }
  func.func @transform_4(%arg0: i32) -> (i32, i32) {
    %c0_i32 = arith.constant 0 : i32
    %c0_i32_0 = arith.constant 0 : i32
    return %arg0, %c0_i32 : i32, i32
  }
  func.func @transform_5(%arg0: i32) -> (i32, i32) {
    %c0_i32 = arith.constant 0 : i32
    %c0_i32_0 = arith.constant 0 : i32
    return %arg0, %c0_i32 : i32, i32
  }
}

module attributes {stable_mosaic.version = 11 : i64} {
  func.func @attention_kernel(%arg0: i32, %arg1: memref<8x16x32xbf16, #tpu.memory_space<vmem>>, %arg2: memref<8x32xf32, #tpu.memory_space<vmem>>, %arg3: memref<32x32xbf16, #tpu.memory_space<vmem>>, %arg4: memref<1x32xf32, #tpu.memory_space<vmem>>, %arg5: memref<8x32xf32, #tpu.memory_space<vmem>>, %arg6: memref<8x16xf32, #tpu.memory_space<vmem>>) attributes {dimension_semantics = [#tpu.dimension_semantics<parallel>], iteration_bounds = array<i64: 1>, scalar_prefetch = 0 : i64, scratch_operands = 0 : i64, tpu.core_type = #tpu.core_type<tc>, window_params = [{transform_indices = @transform_0, window_bounds = array<i64: 8, 16, 32>}, {transform_indices = @transform_1, window_bounds = array<i64: 8, 32>}, {pipeline_mode = #tpu.pipeline_mode<synchronous>, transform_indices = @transform_2, window_bounds = array<i64: 32, 32>}, {pipeline_mode = #tpu.pipeline_mode<synchronous>, transform_indices = @transform_3, window_bounds = array<i64: 1, 32>}, {transform_indices = @transform_4, window_bounds = array<i64: 8, 32>}, {transform_indices = @transform_5, window_bounds = array<i64: 8, 16>}]} {
    %c0 = arith.constant 0 : index
    %c0_0 = arith.constant 0 : index
    %c0_1 = arith.constant 0 : index
    %0 = vector.load %arg1[%c0, %c0_0, %c0_1] : memref<8x16x32xbf16, #tpu.memory_space<vmem>>, vector<8x16x32xbf16>
    %c0_2 = arith.constant 0 : index
    %c0_3 = arith.constant 0 : index
    %1 = vector.load %arg2[%c0_2, %c0_3] : memref<8x32xf32, #tpu.memory_space<vmem>>, vector<8x32xf32>
    %2 = vector.shape_cast %0 : vector<8x16x32xbf16> to vector<128x32xbf16>
    %c0_4 = arith.constant 0 : index
    %c0_5 = arith.constant 0 : index
    %3 = vector.load %arg3[%c0_4, %c0_5] : memref<32x32xbf16, #tpu.memory_space<vmem>>, vector<32x32xbf16>
    %cst = arith.constant dense<0.000000e+00> : vector<128x32xf32>
    %4 = tpu.matmul %2, %3, %cst {dimension_numbers = #tpu.dot_dimension_numbers<[1], [0], [0], [1], [0, 0, 1, 1], [], []>} : vector<128x32xbf16>, vector<32x32xbf16>, vector<128x32xf32> -> vector<128x32xf32>
    %5 = vector.shape_cast %4 : vector<128x32xf32> to vector<8x16x32xf32>
    %6 = vector.shape_cast %1 : vector<8x32xf32> to vector<8x1x32xf32>
    %7 = vector.broadcast %6 : vector<8x1x32xf32> to vector<8x16x32xf32>
    %8 = arith.addf %5, %7 : vector<8x16x32xf32>
    %cst_6 = arith.constant 0.000000e+00 : f32
    %9 = vector.broadcast %cst_6 : f32 to vector<8x16x32xf32>
    %10 = arith.maximumf %8, %9 : vector<8x16x32xf32>
    %c0_7 = arith.constant 0 : index
    %c0_8 = arith.constant 0 : index
    %11 = vector.load %arg4[%c0_7, %c0_8] : memref<1x32xf32, #tpu.memory_space<vmem>>, vector<1x32xf32>
    %12 = vector.shape_cast %11 : vector<1x32xf32> to vector<1x1x32xf32>
    %13 = vector.broadcast %12 : vector<1x1x32xf32> to vector<8x16x32xf32>
    %14 = arith.mulf %10, %13 : vector<8x16x32xf32>
    %cst_9 = arith.constant dense<0.000000e+00> : vector<8x16xf32>
    %15 = vector.multi_reduction <add>, %14, %cst_9 [2] : vector<8x16x32xf32> to vector<8x16xf32>
    %cst_10 = arith.constant dense<0xFF800000> : vector<8xf32>
    %16 = vector.multi_reduction <maximumf>, %15, %cst_10 [1] : vector<8x16xf32> to vector<8xf32>
    %17 = vector.shape_cast %16 : vector<8xf32> to vector<8x1xf32>
    %18 = vector.broadcast %17 : vector<8x1xf32> to vector<8x16xf32>
    %19 = arith.subf %15, %18 : vector<8x16xf32>
    %20 = math.exp %19 : vector<8x16xf32>
    %cst_11 = arith.constant dense<0.000000e+00> : vector<8xf32>
    %21 = vector.multi_reduction <add>, %20, %cst_11 [1] : vector<8x16xf32> to vector<8xf32>
    %22 = vector.shape_cast %21 : vector<8xf32> to vector<8x1xf32>
    %23 = vector.broadcast %22 : vector<8x1xf32> to vector<8x16xf32>
    %24 = arith.divf %20, %23 : vector<8x16xf32>
    %c0_12 = arith.constant 0 : index
    %c0_13 = arith.constant 0 : index
    %25 = vector.load %arg6[%c0_12, %c0_13] : memref<8x16xf32, #tpu.memory_space<vmem>>, vector<8x16xf32>
    tpu.vector_store %arg6[%c0_12, %c0_13], %24 {strides = array<i32>} : memref<8x16xf32, #tpu.memory_space<vmem>>, vector<8x16xf32>,
    %26 = arith.extf %0 : vector<8x16x32xbf16> to vector<8x16x32xf32>
    %27 = vector.shape_cast %24 : vector<8x16xf32> to vector<8x16x1xf32>
    %28 = vector.broadcast %27 : vector<8x16x1xf32> to vector<8x16x32xf32>
    %29 = arith.mulf %26, %28 : vector<8x16x32xf32>
    %cst_14 = arith.constant dense<0.000000e+00> : vector<8x32xf32>
    %30 = vector.multi_reduction <add>, %29, %cst_14 [1] : vector<8x16x32xf32> to vector<8x32xf32>
    %c0_15 = arith.constant 0 : index
    %c0_16 = arith.constant 0 : index
    %31 = vector.load %arg5[%c0_15, %c0_16] : memref<8x32xf32, #tpu.memory_space<vmem>>, vector<8x32xf32>
    tpu.vector_store %arg5[%c0_15, %c0_16], %30 {strides = array<i32>} : memref<8x32xf32, #tpu.memory_space<vmem>>, vector<8x32xf32>,
    return
  }
  func.func @transform_0(%arg0: i32) -> (i32, i32, i32) {
    %c0_i32 = arith.constant 0 : i32
    %c0_i32_0 = arith.constant 0 : i32
    %c0_i32_1 = arith.constant 0 : i32
    return %arg0, %c0_i32, %c0_i32_0 : i32, i32, i32
  }
  func.func @transform_1(%arg0: i32) -> (i32, i32) {
    %c0_i32 = arith.constant 0 : i32
    %c0_i32_0 = arith.constant 0 : i32
    return %arg0, %c0_i32 : i32, i32
  }
  func.func @transform_2(%arg0: i32) -> (i32, i32) {
    %c0_i32 = arith.constant 0 : i32
    %c0_i32_0 = arith.constant 0 : i32
    %c0_i32_1 = arith.constant 0 : i32
    return %c0_i32, %c0_i32_0 : i32, i32
  }
  func.func @transform_3(%arg0: i32) -> (i32, i32) {
    %c0_i32 = arith.constant 0 : i32
    %c0_i32_0 = arith.constant 0 : i32
    %c0_i32_1 = arith.constant 0 : i32
    return %c0_i32, %c0_i32_0 : i32, i32
  }
  func.func @transform_4(%arg0: i32) -> (i32, i32) {
    %c0_i32 = arith.constant 0 : i32
    %c0_i32_0 = arith.constant 0 : i32
    return %arg0, %c0_i32 : i32, i32
  }
  func.func @transform_5(%arg0: i32) -> (i32, i32) {
    %c0_i32 = arith.constant 0 : i32
    %c0_i32_0 = arith.constant 0 : i32
    return %arg0, %c0_i32 : i32, i32
  }
}

</mosaic_0001>

<llo_original>
// kernel: tpu_custom_call.1
$region0: #{tpu_custom_call.1}
  #allocation0 [shape = 'u32[]', space=smem, size = 0x4, offset = 0x4, fixed_abs, tag = 'smem constant byte address 0x4 - core index']
  #allocation1 [shape = 'u32[144,128]{1,0:T(1,128)}', space=vmem, size = 0x12000, scoped, tag = 'internal scratch']
  %s0 = inlined_call_operand.hbm [shape: bf16[8,16,32], index: 0, kind: input, shape index: {}]
  %s1 = inlined_call_operand.hbm [shape: f32[8,32], index: 1, kind: input, shape index: {}]
  %s2 = inlined_call_operand.hbm [shape: bf16[32,32], index: 2, kind: input, shape index: {}]
  %s3 = inlined_call_operand.vmem [shape: f32[1,32], index: 3, kind: input, shape index: {}]
  %s4 = inlined_call_operand.hbm [shape: f32[8,32], index: 4, kind: output, shape index: {0}]
  %s5 = inlined_call_operand.hbm [shape: f32[8,16], index: 5, kind: output, shape index: {1}]
  %6 = xla_tuple %s4, %s5
  %s7 = sld [smem:[#allocation0]]
  $region46: #{tpu_custom_call.1} parent=0
    _
  %s9 = ssub.s32 1, %s7
  %s10 = scalar_select 0, %s9, %s7
  $region1: #{tpu_custom_call.1} parent=0
    #allocation2 [shape = 'u8[32768]{0}', space=vmem, size = 0x8000, scoped, tag = 'input window, operand 0, single buffered']
    #allocation3 [shape = 's32[1]{0}', space=sflag, size = 0x4, scoped, tag = 'scoped memory for tpu_custom_call.1']
    #allocation4 [shape = 's32[1]{0}', space=sflag, size = 0x4, scoped, tag = 'scoped memory for tpu_custom_call.1']
    #allocation5 [shape = 'u8[4096]{0}', space=vmem, size = 0x1000, scoped, tag = 'input window, operand 1, single buffered']
    #allocation6 [shape = 's32[1]{0}', space=sflag, size = 0x4, scoped, tag = 'scoped memory for tpu_custom_call.1']
    #allocation7 [shape = 'u8[8192]{0}', space=vmem, size = 0x2000, scoped, tag = 'input window, operand 2, single buffered']
    #allocation8 [shape = 'u8[4096]{0}', space=vmem, size = 0x1000, scoped, tag = 'output window, operand 0, single buffered']
    #allocation9 [shape = 'u8[4096]{0}', space=vmem, size = 0x1000, scoped, tag = 'output window, operand 1, single buffered']
    #allocation10 [shape = 's32[1]{0}', space=sflag, size = 0x4, scoped, tag = 'scoped memory for tpu_custom_call.1']
    %11 = vsyncpa [#allocation3], 0
    %12 = vsyncpa [#allocation6], 0
    %13 = vsyncpa [#allocation4], 0
    %14 = vsyncpa [#allocation10], 0
    // Predicated region
    $region2: #{tpu_custom_call.1} parent=1 // pred_check
      _
    $region3: #{tpu_custom_call.1} parent=1 // pred_check_branch
      %16 = sbr.rel (0) target = $region5
    $region4: #{tpu_custom_call.1} parent=1 // pred_region
      %s18 = ssub.s32 1024, 1024
      %19 = vsyncadd [#allocation3], %s18
      %s20 = sshll.u32 [#allocation2], 4
      %s21 = int_to_ptr.vmem [resolvable:$true] %s20
      %26 = dma.hbm_to_vmem [thread:$0]  %s0, 1024, %s21, [#allocation3], 64, 64, 4
    $region5: #{tpu_custom_call.1} parent=1 // pred_fallthru
      _
    // Predicated region
    $region6: #{tpu_custom_call.1} parent=1 // pred_check
      _
    $region7: #{tpu_custom_call.1} parent=1 // pred_check_branch
      %28 = sbr.rel (0) target = $region9
    $region8: #{tpu_custom_call.1} parent=1 // pred_region
      %s30 = ssub.s32 128, 128
      %31 = vsyncadd [#allocation6], %s30
      %s33 = sshll.u32 [#allocation5], 4
      %s34 = int_to_ptr.vmem [resolvable:$true] %s33
      %36 = dma.hbm_to_vmem [thread:$0]  %s1, 128, %s34, [#allocation6]
    $region9: #{tpu_custom_call.1} parent=1 // pred_fallthru
      _
    // Predicated region
    $region10: #{tpu_custom_call.1} parent=1 // pred_check
      _
    $region11: #{tpu_custom_call.1} parent=1 // pred_check_branch
      %38 = sbr.rel (0) target = $region13
    $region12: #{tpu_custom_call.1} parent=1 // pred_region
      %s40 = ssub.s32 256, 256
      %41 = vsyncadd [#allocation6], %s40
      %s42 = sshll.u32 [#allocation7], 4
      %s43 = int_to_ptr.vmem [resolvable:$true] %s42
      %48 = dma.hbm_to_vmem [thread:$0]  %s2, 256, %s43, [#allocation6], 64, 64, 4
    $region13: #{tpu_custom_call.1} parent=1 // pred_fallthru
      _
    // Predicated region
    $region14: #{tpu_custom_call.1} parent=1 // pred_check
      _
    $region15: #{tpu_custom_call.1} parent=1 // pred_check_branch
      %50 = sbr.rel (0) target = $region17
    $region16: #{tpu_custom_call.1} parent=1 // pred_region
      _
    $region17: #{tpu_custom_call.1} parent=1 // pred_fallthru
      _
    // Predicated region
    $region18: #{tpu_custom_call.1} parent=1 // pred_check
      _
    $region19: #{tpu_custom_call.1} parent=1 // pred_check_branch
      %52 = sbr.rel (0) target = $region21
    $region20: #{tpu_custom_call.1} parent=1 // pred_region
      %53 = dma.done [#allocation3], 1024
    $region21: #{tpu_custom_call.1} parent=1 // pred_fallthru
      _
    // Predicated region
    $region22: #{tpu_custom_call.1} parent=1 // pred_check
      _
    $region23: #{tpu_custom_call.1} parent=1 // pred_check_branch
      %55 = sbr.rel (0) target = $region25
    $region24: #{tpu_custom_call.1} parent=1 // pred_region
      %56 = dma.done [#allocation6], 128
    $region25: #{tpu_custom_call.1} parent=1 // pred_fallthru
      _
    // Predicated region
    $region26: #{tpu_custom_call.1} parent=1 // pred_check
      _
    $region27: #{tpu_custom_call.1} parent=1 // pred_check_branch
      %58 = sbr.rel (0) target = $region29
    $region28: #{tpu_custom_call.1} parent=1 // pred_region
      %59 = dma.done [#allocation6], 256
    $region29: #{tpu_custom_call.1} parent=1 // pred_fallthru
      _
    %v61 = vld [vmem:[#allocation2] sm:$0xf]
    %v62 = vld [vmem:[#allocation2 + $0x4] sm:$0xf]
    %v63 = vld [vmem:[#allocation2 + $0x8] sm:$0xf]
    %v64 = vld [vmem:[#allocation2 + $0xc] sm:$0xf]
    %v65 = vld [vmem:[#allocation2 + $0x10] sm:$0xf]
    %v66 = vld [vmem:[#allocation2 + $0x14] sm:$0xf]
    %v67 = vld [vmem:[#allocation2 + $0x18] sm:$0xf]
    %v68 = vld [vmem:[#allocation2 + $0x1c] sm:$0xf]
    %v69 = vld [vmem:[#allocation2 + $0x20] sm:$0xf]
    %v70 = vld [vmem:[#allocation2 + $0x24] sm:$0xf]
    %v71 = vld [vmem:[#allocation2 + $0x28] sm:$0xf]
    %v72 = vld [vmem:[#allocation2 + $0x2c] sm:$0xf]
    %v73 = vld [vmem:[#allocation2 + $0x30] sm:$0xf]
    %v74 = vld [vmem:[#allocation2 + $0x34] sm:$0xf]
    %v75 = vld [vmem:[#allocation2 + $0x38] sm:$0xf]
    %v76 = vld [vmem:[#allocation2 + $0x3c] sm:$0xf]
    %v77 = vld [vmem:[#allocation5] sm:$0xff]
    %v78 = vld [vmem:[#allocation7] sm:$0xf]
    %v79 = vld [vmem:[#allocation7 + $0x4] sm:$0xf]
    %v80 = vld [vmem:[#allocation7 + $0x8] sm:$0xf]
    %v81 = vld [vmem:[#allocation7 + $0xc] sm:$0xf]
    %v98 = vunpack.c.l.b16 %v61
    %v99 = vunpack.c.l.b16 %v62
    %v100 = vunpack.c.l.b16 %v63
    %v101 = vunpack.c.l.b16 %v64
    %v102 = vunpack.c.l.b16 %v65
    %v103 = vunpack.c.l.b16 %v66
    %v104 = vunpack.c.l.b16 %v67
    %v105 = vunpack.c.l.b16 %v68
    %v106 = vunpack.c.l.b16 %v69
    %v107 = vunpack.c.l.b16 %v70
    %v108 = vunpack.c.l.b16 %v71
    %v109 = vunpack.c.l.b16 %v72
    %v110 = vunpack.c.l.b16 %v73
    %v111 = vunpack.c.l.b16 %v74
    %v112 = vunpack.c.l.b16 %v75
    %v113 = vunpack.c.l.b16 %v76
    %v114 = vpack.c.b16 %v99, %v98
    %v115 = vpack.c.b16 %v101, %v100
    %v116 = vpack.c.b16 %v103, %v102
    %v117 = vpack.c.b16 %v105, %v104
    %v118 = vpack.c.b16 %v107, %v106
    %v119 = vpack.c.b16 %v109, %v108
    %v120 = vpack.c.b16 %v111, %v110
    %v121 = vpack.c.b16 %v113, %v112
    %v126 = vunpack.c.l.b16 %v78
    %v127 = vunpack.c.l.b16 %v79
    %v128 = vunpack.c.l.b16 %v80
    %v129 = vunpack.c.l.b16 %v81
    %v130 = vpack.c.b16 %v127, %v126
    %v131 = vpack.c.b16 %v129, %v128
    %vm134 = vcmask 261120
    %v136 = vsel %vm134, %v114, 0
    %v139 = vsel %vm134, %v115, 0
    %v142 = vsel %vm134, %v116, 0
    %v145 = vsel %vm134, %v117, 0
    %v148 = vsel %vm134, %v118, 0
    %v151 = vsel %vm134, %v119, 0
    %v154 = vsel %vm134, %v120, 0
    %v157 = vsel %vm134, %v121, 0
    %159 = vmatprep.subr.bf16.mxu0 0
    %160 = vmatpush1.bf16.msra.mxu0 %v130
    %161 = vmatprep.subr.bf16.mxu0 0
    %162 = vmatpush1.bf16.msra.mxu0 %v131
    %163 = vmatprep.subr.bf16.mxu0 0
    %164 = vmatpush1.bf16.msra.mxu0 0
    %165 = vmatprep.subr.bf16.mxu0 0
    %166 = vmatpush1.bf16.msra.mxu0 0
    %167 = vmatprep.subr.bf16.mxu0 0
    %168 = vmatpush1.bf16.msra.mxu0 0
    %169 = vmatprep.subr.bf16.mxu0 0
    %170 = vmatpush1.bf16.msra.mxu0 0
    %171 = vmatprep.subr.bf16.mxu0 0
    %172 = vmatpush1.bf16.msra.mxu0 0
    %173 = vmatprep.subr.bf16.mxu0 0
    %174 = vmatpush1.bf16.msra.mxu0 0
    %175 = vmatprep.subr.bf16.mxu0 0
    %176 = vmatpush1.bf16.msra.mxu0 0
    %177 = vmatprep.subr.bf16.mxu0 0
    %178 = vmatpush1.bf16.msra.mxu0 0
    %179 = vmatprep.subr.bf16.mxu0 0
    %180 = vmatpush1.bf16.msra.mxu0 0
    %181 = vmatprep.subr.bf16.mxu0 0
    %182 = vmatpush1.bf16.msra.mxu0 0
    %183 = vmatprep.subr.bf16.mxu0 0
    %184 = vmatpush1.bf16.msra.mxu0 0
    %185 = vmatprep.subr.bf16.mxu0 0
    %186 = vmatpush1.bf16.msra.mxu0 0
    %187 = vmatprep.subr.bf16.mxu0 0
    %188 = vmatpush1.bf16.msra.mxu0 0
    %189 = vmatprep.subr.bf16.mxu0 0
    %190 = vmatpush1.bf16.msra.mxu0 0
    %191 = vmatprep.mubr.bf16.mxu0 0
    %192 = vmatmul.mubr.bf16.gmra.mrb[0].mxu0 %v136
    %v193 = vpop.f32.mrb[0].mxu0
    %v194 = vadd.f32 0.0, %v193
    %v195 = vpop.f32.mrb[0].mxu0
    %v196 = vpop.f32.mrb[0].mxu0
    %v197 = vadd.f32 0.0, %v196
    %v198 = vpop.f32.mrb[0].mxu0
    %199 = vmatprep.mubr.bf16.mxu0 0
    %200 = vmatmul.mubr.bf16.gmra.mrb[0].mxu0 %v139
    %v201 = vpop.f32.mrb[0].mxu0
    %v202 = vadd.f32 0.0, %v201
    %v203 = vpop.f32.mrb[0].mxu0
    %v204 = vpop.f32.mrb[0].mxu0
    %v205 = vadd.f32 0.0, %v204
    %v206 = vpop.f32.mrb[0].mxu0
    %207 = vmatprep.mubr.bf16.mxu0 0
    %208 = vmatmul.mubr.bf16.gmra.mrb[0].mxu0 %v142
    %v209 = vpop.f32.mrb[0].mxu0
    %v210 = vadd.f32 0.0, %v209
    %v211 = vpop.f32.mrb[0].mxu0
    %v212 = vpop.f32.mrb[0].mxu0
    %v213 = vadd.f32 0.0, %v212
    %v214 = vpop.f32.mrb[0].mxu0
    %215 = vmatprep.mubr.bf16.mxu0 0
    %216 = vmatmul.mubr.bf16.gmra.mrb[0].mxu0 %v145
    %v217 = vpop.f32.mrb[0].mxu0
    %v218 = vadd.f32 0.0, %v217
    %v219 = vpop.f32.mrb[0].mxu0
    %v220 = vpop.f32.mrb[0].mxu0
    %v221 = vadd.f32 0.0, %v220
    %v222 = vpop.f32.mrb[0].mxu0
    %223 = vmatprep.mubr.bf16.mxu0 0
    %224 = vmatmul.mubr.bf16.gmra.mrb[0].mxu0 %v148
    %v225 = vpop.f32.mrb[0].mxu0
    %v226 = vadd.f32 0.0, %v225
    %v227 = vpop.f32.mrb[0].mxu0
    %v228 = vpop.f32.mrb[0].mxu0
    %v229 = vadd.f32 0.0, %v228
    %v230 = vpop.f32.mrb[0].mxu0
    %231 = vmatprep.mubr.bf16.mxu0 0
    %232 = vmatmul.mubr.bf16.gmra.mrb[0].mxu0 %v151
    %v233 = vpop.f32.mrb[0].mxu0
    %v234 = vadd.f32 0.0, %v233
    %v235 = vpop.f32.mrb[0].mxu0
    %v236 = vpop.f32.mrb[0].mxu0
    %v237 = vadd.f32 0.0, %v236
    %v238 = vpop.f32.mrb[0].mxu0
    %239 = vmatprep.mubr.bf16.mxu0 0
    %240 = vmatmul.mubr.bf16.gmra.mrb[0].mxu0 %v154
    %v241 = vpop.f32.mrb[0].mxu0
    %v242 = vadd.f32 0.0, %v241
    %v243 = vpop.f32.mrb[0].mxu0
    %v244 = vpop.f32.mrb[0].mxu0
    %v245 = vadd.f32 0.0, %v244
    %v246 = vpop.f32.mrb[0].mxu0
    %247 = vmatprep.mubr.bf16.mxu0 0
    %248 = vmatmul.mubr.bf16.gmra.mrb[0].mxu0 %v157
    %v249 = vpop.f32.mrb[0].mxu0
    %v250 = vadd.f32 0.0, %v249
    %v251 = vpop.f32.mrb[0].mxu0
    %v252 = vpop.f32.mrb[0].mxu0
    %v253 = vadd.f32 0.0, %v252
    %v254 = vpop.f32.mrb[0].mxu0
    %255 = vdwg.mxu0
    %v257 = vcombine.high %v77, %v77
    %v259 = vunpack.c.l.s4 1966171168
    %v260 = vunpack.c.0.s8 %v259
    %v261 = vlaneseq
    %v262 = vshrl.u32 %v261, 7
    %v263 = vsub.s32 %v260, %v262
    %v264 = vrot.slane %v77, %v263
    %v266 = vunpack.c.l.s4 1966171168
    %v267 = vunpack.c.0.s8 %v266
    %v268 = vlaneseq
    %v269 = vshrl.u32 %v268, 7
    %v270 = vsub.s32 %v267, %v269
    %v271 = vrot.slane %v257, %v270
    %v272 = vcombine.high %v264, %v264
    %v273 = vcombine.high %v271, %v271
    %v275 = vunpack.c.l.s4 1966171168
    %v276 = vunpack.c.0.s8 %v275
    %v277 = vlaneseq
    %v278 = vshrl.u32 %v277, 7
    %v279 = vsub.s32 %v276, %v278
    %v280 = vrot.slane %v264, %v279
    %v282 = vunpack.c.l.s4 1966171168
    %v283 = vunpack.c.0.s8 %v282
    %v284 = vlaneseq
    %v285 = vshrl.u32 %v284, 7
    %v286 = vsub.s32 %v283, %v285
    %v287 = vrot.slane %v271, %v286
    %v289 = vunpack.c.l.s4 1966171168
    %v290 = vunpack.c.0.s8 %v289
    %v291 = vlaneseq
    %v292 = vshrl.u32 %v291, 7
    %v293 = vsub.s32 %v290, %v292
    %v294 = vrot.slane %v272, %v293
    %v296 = vunpack.c.l.s4 1966171168
    %v297 = vunpack.c.0.s8 %v296
    %v298 = vlaneseq
    %v299 = vshrl.u32 %v298, 7
    %v300 = vsub.s32 %v297, %v299
    %v301 = vrot.slane %v273, %v300
    %v302 = vcombine.high %v280, %v280
    %v303 = vcombine.high %v287, %v287
    %v304 = vcombine.high %v294, %v294
    %v305 = vcombine.high %v301, %v301
    %v306 = vlaneseq
    %v307 = vshrl.u32 %v306, 7
    %v308 = vsub.s32 0, %v307
    %v309 = vrot.slane %v280, %v308
    %v310 = vlaneseq
    %v311 = vshrl.u32 %v310, 7
    %v312 = vsub.s32 0, %v311
    %v313 = vrot.slane %v294, %v312
    %v314 = vlaneseq
    %v315 = vshrl.u32 %v314, 7
    %v316 = vsub.s32 0, %v315
    %v317 = vrot.slane %v302, %v316
    %v318 = vlaneseq
    %v319 = vshrl.u32 %v318, 7
    %v320 = vsub.s32 0, %v319
    %v321 = vrot.slane %v304, %v320
    %v322 = vlaneseq
    %v323 = vshrl.u32 %v322, 7
    %v324 = vsub.s32 0, %v323
    %v325 = vrot.slane %v287, %v324
    %v326 = vlaneseq
    %v327 = vshrl.u32 %v326, 7
    %v328 = vsub.s32 0, %v327
    %v329 = vrot.slane %v301, %v328
    %v330 = vlaneseq
    %v331 = vshrl.u32 %v330, 7
    %v332 = vsub.s32 0, %v331
    %v333 = vrot.slane %v303, %v332
    %v334 = vlaneseq
    %v335 = vshrl.u32 %v334, 7
    %v336 = vsub.s32 0, %v335
    %v337 = vrot.slane %v305, %v336
    %v346 = vadd.f32 %v194, %v309
    %v347 = vadd.f32 %v197, %v309
    %v348 = vadd.f32 %v202, %v313
    %v349 = vadd.f32 %v205, %v313
    %v350 = vadd.f32 %v210, %v317
    %v351 = vadd.f32 %v213, %v317
    %v352 = vadd.f32 %v218, %v321
    %v353 = vadd.f32 %v221, %v321
    %v354 = vadd.f32 %v226, %v325
    %v355 = vadd.f32 %v229, %v325
    %v356 = vadd.f32 %v234, %v329
    %v357 = vadd.f32 %v237, %v329
    %v358 = vadd.f32 %v242, %v333
    %v359 = vadd.f32 %v245, %v333
    %v360 = vadd.f32 %v250, %v337
    %v361 = vadd.f32 %v253, %v337
    %v362 = vmax.f32 %v346, 0.0
    %v363 = vmax.f32 %v347, 0.0
    %v364 = vmax.f32 %v348, 0.0
    %v365 = vmax.f32 %v349, 0.0
    %v366 = vmax.f32 %v350, 0.0
    %v367 = vmax.f32 %v351, 0.0
    %v368 = vmax.f32 %v352, 0.0
    %v369 = vmax.f32 %v353, 0.0
    %v370 = vmax.f32 %v354, 0.0
    %v371 = vmax.f32 %v355, 0.0
    %v372 = vmax.f32 %v356, 0.0
    %v373 = vmax.f32 %v357, 0.0
    %v374 = vmax.f32 %v358, 0.0
    %v375 = vmax.f32 %v359, 0.0
    %v376 = vmax.f32 %v360, 0.0
    %v377 = vmax.f32 %v361, 0.0
    %v378 = vld [vmem:[%s3] sm:$0x1]
    %v380 = vlaneseq
    %v381 = vshrl.u32 %v380, 7
    %v382 = vsub.s32 0, %v381
    %v383 = vrot.slane %v378, %v382
    %v385 = vmul.f32 %v362, %v383
    %v386 = vmul.f32 %v363, %v383
    %v387 = vmul.f32 %v364, %v383
    %v388 = vmul.f32 %v365, %v383
    %v389 = vmul.f32 %v366, %v383
    %v390 = vmul.f32 %v367, %v383
    %v391 = vmul.f32 %v368, %v383
    %v392 = vmul.f32 %v369, %v383
    %v393 = vmul.f32 %v370, %v383
    %v394 = vmul.f32 %v371, %v383
    %v395 = vmul.f32 %v372, %v383
    %v396 = vmul.f32 %v373, %v383
    %v397 = vmul.f32 %v374, %v383
    %v398 = vmul.f32 %v375, %v383
    %v399 = vmul.f32 %v376, %v383
    %v400 = vmul.f32 %v377, %v383
    %v401 = vsel %vm134, %v385, 0.0
    %402 = vadd.xlane.f32.xlu0 %v401
    %v403 = vpop.xlane.xlu0 %402
    %v404 = vsel %vm134, %v386, 0.0
    %405 = vadd.xlane.f32.xlu0 %v404
    %v406 = vpop.xlane.xlu0 %405
    %v407 = vsel %vm134, %v387, 0.0
    %408 = vadd.xlane.f32.xlu0 %v407
    %v409 = vpop.xlane.xlu0 %408
    %v410 = vsel %vm134, %v388, 0.0
    %411 = vadd.xlane.f32.xlu0 %v410
    %v412 = vpop.xlane.xlu0 %411
    %v413 = vsel %vm134, %v389, 0.0
    %414 = vadd.xlane.f32.xlu0 %v413
    %v415 = vpop.xlane.xlu0 %414
    %v416 = vsel %vm134, %v390, 0.0
    %417 = vadd.xlane.f32.xlu0 %v416
    %v418 = vpop.xlane.xlu0 %417
    %v419 = vsel %vm134, %v391, 0.0
    %420 = vadd.xlane.f32.xlu0 %v419
    %v421 = vpop.xlane.xlu0 %420
    %v422 = vsel %vm134, %v392, 0.0
    %423 = vadd.xlane.f32.xlu0 %v422
    %v424 = vpop.xlane.xlu0 %423
    %v425 = vsel %vm134, %v393, 0.0
    %426 = vadd.xlane.f32.xlu0 %v425
    %v427 = vpop.xlane.xlu0 %426
    %v428 = vsel %vm134, %v394, 0.0
    %429 = vadd.xlane.f32.xlu0 %v428
    %v430 = vpop.xlane.xlu0 %429
    %v431 = vsel %vm134, %v395, 0.0
    %432 = vadd.xlane.f32.xlu0 %v431
    %v433 = vpop.xlane.xlu0 %432
    %v434 = vsel %vm134, %v396, 0.0
    %435 = vadd.xlane.f32.xlu0 %v434
    %v436 = vpop.xlane.xlu0 %435
    %v437 = vsel %vm134, %v397, 0.0
    %438 = vadd.xlane.f32.xlu0 %v437
    %v439 = vpop.xlane.xlu0 %438
    %v440 = vsel %vm134, %v398, 0.0
    %441 = vadd.xlane.f32.xlu0 %v440
    %v442 = vpop.xlane.xlu0 %441
    %v443 = vsel %vm134, %v399, 0.0
    %444 = vadd.xlane.f32.xlu0 %v443
    %v445 = vpop.xlane.xlu0 %444
    %v446 = vsel %vm134, %v400, 0.0
    %447 = vadd.xlane.f32.xlu0 %v446
    %v448 = vpop.xlane.xlu0 %447
    %v465 = vlaneseq
    %v466 = vand.u32 %v465, 127
    %v467 = vlaneseq
    %v468 = vshrl.u32 %v467, 7
    %v469 = vsub.s32 %v466, %v468
    %v470 = vrot.slane %v403, %v469
    %v471 = vadd.s32 %v466, 4294967288
    %v472 = vlaneseq
    %v473 = vshrl.u32 %v472, 7
    %v474 = vsub.s32 %v471, %v473
    %v475 = vrot.slane %v406, %v474
    %vm476 = vcmask 130112
    %v477 = vsel %vm476, %v475, %v470
    %v478 = vlaneseq
    %v479 = vshrl.u32 %v478, 7
    %v480 = vsub.s32 %v466, %v479
    %v481 = vrot.slane %v409, %v480
    %v482 = vlaneseq
    %v483 = vshrl.u32 %v482, 7
    %v484 = vsub.s32 %v471, %v483
    %v485 = vrot.slane %v412, %v484
    %v486 = vsel %vm476, %v485, %v481
    %v487 = vlaneseq
    %v488 = vshrl.u32 %v487, 7
    %v489 = vsub.s32 %v466, %v488
    %v490 = vrot.slane %v415, %v489
    %v491 = vlaneseq
    %v492 = vshrl.u32 %v491, 7
    %v493 = vsub.s32 %v471, %v492
    %v494 = vrot.slane %v418, %v493
    %v495 = vsel %vm476, %v494, %v490
    %v496 = vlaneseq
    %v497 = vshrl.u32 %v496, 7
    %v498 = vsub.s32 %v466, %v497
    %v499 = vrot.slane %v421, %v498
    %v500 = vlaneseq
    %v501 = vshrl.u32 %v500, 7
    %v502 = vsub.s32 %v471, %v501
    %v503 = vrot.slane %v424, %v502
    %v504 = vsel %vm476, %v503, %v499
    %v505 = vlaneseq
    %v506 = vshrl.u32 %v505, 7
    %v507 = vsub.s32 %v466, %v506
    %v508 = vrot.slane %v427, %v507
    %v509 = vlaneseq
    %v510 = vshrl.u32 %v509, 7
    %v511 = vsub.s32 %v471, %v510
    %v512 = vrot.slane %v430, %v511
    %v513 = vsel %vm476, %v512, %v508
    %v514 = vlaneseq
    %v515 = vshrl.u32 %v514, 7
    %v516 = vsub.s32 %v466, %v515
    %v517 = vrot.slane %v433, %v516
    %v518 = vlaneseq
    %v519 = vshrl.u32 %v518, 7
    %v520 = vsub.s32 %v471, %v519
    %v521 = vrot.slane %v436, %v520
    %v522 = vsel %vm476, %v521, %v517
    %v523 = vlaneseq
    %v524 = vshrl.u32 %v523, 7
    %v525 = vsub.s32 %v466, %v524
    %v526 = vrot.slane %v439, %v525
    %v527 = vlaneseq
    %v528 = vshrl.u32 %v527, 7
    %v529 = vsub.s32 %v471, %v528
    %v530 = vrot.slane %v442, %v529
    %v531 = vsel %vm476, %v530, %v526
    %v532 = vlaneseq
    %v533 = vshrl.u32 %v532, 7
    %v534 = vsub.s32 %v466, %v533
    %v535 = vrot.slane %v445, %v534
    %v536 = vlaneseq
    %v537 = vshrl.u32 %v536, 7
    %v538 = vsub.s32 %v471, %v537
    %v539 = vrot.slane %v448, %v538
    %v540 = vsel %vm476, %v539, %v535
    %vm541 = vcmask 1041409
    %v542 = vsel %vm541, %v486, %v477
    %vm543 = vcmask 1042434
    %v544 = vsel %vm543, %v495, %v542
    %vm545 = vcmask 1043459
    %v546 = vsel %vm545, %v504, %v544
    %vm547 = vcmask 1044484
    %v548 = vsel %vm547, %v513, %v546
    %vm549 = vcmask 1045509
    %v550 = vsel %vm549, %v522, %v548
    %vm551 = vcmask 1046534
    %v552 = vsel %vm551, %v531, %v550
    %vm553 = vcmask 1047559
    %v554 = vsel %vm553, %v540, %v552
    %vm556 = vcmask 130048
    %v557 = vsel %vm556, %v554, -inf
    %558 = vmax.xlane.f32.xlu0 %v557
    %v559 = vpop.xlane.xlu0 %558
    %v561 = vlaneseq
    %v562 = vshrl.u32 %v561, 7
    %v563 = vsub.s32 0, %v562
    %v564 = vrot.slane %v559, %v563
    %v565 = vlaneseq
    %v566 = vshrl.u32 %v565, 7
    %v567 = vsub.s32 1, %v566
    %v568 = vrot.slane %v559, %v567
    %v569 = vlaneseq
    %v570 = vshrl.u32 %v569, 7
    %v571 = vsub.s32 2, %v570
    %v572 = vrot.slane %v559, %v571
    %v573 = vlaneseq
    %v574 = vshrl.u32 %v573, 7
    %v575 = vsub.s32 3, %v574
    %v576 = vrot.slane %v559, %v575
    %v577 = vlaneseq
    %v578 = vshrl.u32 %v577, 7
    %v579 = vsub.s32 4, %v578
    %v580 = vrot.slane %v559, %v579
    %v581 = vlaneseq
    %v582 = vshrl.u32 %v581, 7
    %v583 = vsub.s32 5, %v582
    %v584 = vrot.slane %v559, %v583
    %v585 = vlaneseq
    %v586 = vshrl.u32 %v585, 7
    %v587 = vsub.s32 6, %v586
    %v588 = vrot.slane %v559, %v587
    %v589 = vlaneseq
    %v590 = vshrl.u32 %v589, 7
    %v591 = vsub.s32 7, %v590
    %v592 = vrot.slane %v559, %v591
    %v601 = vsub.f32 %v403, %v564
    %v602 = vsub.f32 %v406, %v564
    %v603 = vsub.f32 %v409, %v568
    %v604 = vsub.f32 %v412, %v568
    %v605 = vsub.f32 %v415, %v572
    %v606 = vsub.f32 %v418, %v572
    %v607 = vsub.f32 %v421, %v576
    %v608 = vsub.f32 %v424, %v576
    %v609 = vsub.f32 %v427, %v580
    %v610 = vsub.f32 %v430, %v580
    %v611 = vsub.f32 %v433, %v584
    %v612 = vsub.f32 %v436, %v584
    %v613 = vsub.f32 %v439, %v588
    %v614 = vsub.f32 %v442, %v588
    %v615 = vsub.f32 %v445, %v592
    %v616 = vsub.f32 %v448, %v592
    %v617 = vmul.f32 %v601, 1.442695
    %v618 = vpow.pop %v617
    %v619 = vmul.f32 %v602, 1.442695
    %v620 = vpow.pop %v619
    %v621 = vmul.f32 %v603, 1.442695
    %v622 = vpow.pop %v621
    %v623 = vmul.f32 %v604, 1.442695
    %v624 = vpow.pop %v623
    %v625 = vmul.f32 %v605, 1.442695
    %v626 = vpow.pop %v625
    %v627 = vmul.f32 %v606, 1.442695
    %v628 = vpow.pop %v627
    %v629 = vmul.f32 %v607, 1.442695
    %v630 = vpow.pop %v629
    %v631 = vmul.f32 %v608, 1.442695
    %v632 = vpow.pop %v631
    %v633 = vmul.f32 %v609, 1.442695
    %v634 = vpow.pop %v633
    %v635 = vmul.f32 %v610, 1.442695
    %v636 = vpow.pop %v635
    %v637 = vmul.f32 %v611, 1.442695
    %v638 = vpow.pop %v637
    %v639 = vmul.f32 %v612, 1.442695
    %v640 = vpow.pop %v639
    %v641 = vmul.f32 %v613, 1.442695
    %v642 = vpow.pop %v641
    %v643 = vmul.f32 %v614, 1.442695
    %v644 = vpow.pop %v643
    %v645 = vmul.f32 %v615, 1.442695
    %v646 = vpow.pop %v645
    %v647 = vmul.f32 %v616, 1.442695
    %v648 = vpow.pop %v647
    %665 = vset.pattern.permute.xlu0 0
    %666 = vperm.xlu0 %665, %v618
    %v667 = vpop.permute.xlu0 %666
    %668 = vset.pattern.permute.xlu0 0
    %669 = vperm.xlu0 %668, %v620
    %v670 = vpop.permute.xlu0 %669
    %671 = vset.pattern.permute.xlu0 0
    %672 = vperm.xlu0 %671, %v622
    %v673 = vpop.permute.xlu0 %672
    %674 = vset.pattern.permute.xlu0 0
    %675 = vperm.xlu0 %674, %v624
    %v676 = vpop.permute.xlu0 %675
    %677 = vset.pattern.permute.xlu0 0
    %678 = vperm.xlu0 %677, %v626
    %v679 = vpop.permute.xlu0 %678
    %680 = vset.pattern.permute.xlu0 0
    %681 = vperm.xlu0 %680, %v628
    %v682 = vpop.permute.xlu0 %681
    %683 = vset.pattern.permute.xlu0 0
    %684 = vperm.xlu0 %683, %v630
    %v685 = vpop.permute.xlu0 %684
    %686 = vset.pattern.permute.xlu0 0
    %687 = vperm.xlu0 %686, %v632
    %v688 = vpop.permute.xlu0 %687
    %689 = vset.pattern.permute.xlu0 0
    %690 = vperm.xlu0 %689, %v634
    %v691 = vpop.permute.xlu0 %690
    %692 = vset.pattern.permute.xlu0 0
    %693 = vperm.xlu0 %692, %v636
    %v694 = vpop.permute.xlu0 %693
    %695 = vset.pattern.permute.xlu0 0
    %696 = vperm.xlu0 %695, %v638
    %v697 = vpop.permute.xlu0 %696
    %698 = vset.pattern.permute.xlu0 0
    %699 = vperm.xlu0 %698, %v640
    %v700 = vpop.permute.xlu0 %699
    %701 = vset.pattern.permute.xlu0 0
    %702 = vperm.xlu0 %701, %v642
    %v703 = vpop.permute.xlu0 %702
    %704 = vset.pattern.permute.xlu0 0
    %705 = vperm.xlu0 %704, %v644
    %v706 = vpop.permute.xlu0 %705
    %707 = vset.pattern.permute.xlu0 0
    %708 = vperm.xlu0 %707, %v646
    %v709 = vpop.permute.xlu0 %708
    %710 = vset.pattern.permute.xlu0 0
    %711 = vperm.xlu0 %710, %v648
    %v712 = vpop.permute.xlu0 %711
    %v713 = vlaneseq
    %v714 = vshrl.u32 %v713, 7
    %v715 = vsub.s32 %v466, %v714
    %v716 = vrot.slane %v667, %v715
    %v717 = vlaneseq
    %v718 = vshrl.u32 %v717, 7
    %v719 = vsub.s32 %v471, %v718
    %v720 = vrot.slane %v670, %v719
    %v721 = vsel %vm476, %v720, %v716
    %v722 = vlaneseq
    %v723 = vshrl.u32 %v722, 7
    %v724 = vsub.s32 %v466, %v723
    %v725 = vrot.slane %v673, %v724
    %v726 = vlaneseq
    %v727 = vshrl.u32 %v726, 7
    %v728 = vsub.s32 %v471, %v727
    %v729 = vrot.slane %v676, %v728
    %v730 = vsel %vm476, %v729, %v725
    %v731 = vlaneseq
    %v732 = vshrl.u32 %v731, 7
    %v733 = vsub.s32 %v466, %v732
    %v734 = vrot.slane %v679, %v733
    %v735 = vlaneseq
    %v736 = vshrl.u32 %v735, 7
    %v737 = vsub.s32 %v471, %v736
    %v738 = vrot.slane %v682, %v737
    %v739 = vsel %vm476, %v738, %v734
    %v740 = vlaneseq
    %v741 = vshrl.u32 %v740, 7
    %v742 = vsub.s32 %v466, %v741
    %v743 = vrot.slane %v685, %v742
    %v744 = vlaneseq
    %v745 = vshrl.u32 %v744, 7
    %v746 = vsub.s32 %v471, %v745
    %v747 = vrot.slane %v688, %v746
    %v748 = vsel %vm476, %v747, %v743
    %v749 = vlaneseq
    %v750 = vshrl.u32 %v749, 7
    %v751 = vsub.s32 %v466, %v750
    %v752 = vrot.slane %v691, %v751
    %v753 = vlaneseq
    %v754 = vshrl.u32 %v753, 7
    %v755 = vsub.s32 %v471, %v754
    %v756 = vrot.slane %v694, %v755
    %v757 = vsel %vm476, %v756, %v752
    %v758 = vlaneseq
    %v759 = vshrl.u32 %v758, 7
    %v760 = vsub.s32 %v466, %v759
    %v761 = vrot.slane %v697, %v760
    %v762 = vlaneseq
    %v763 = vshrl.u32 %v762, 7
    %v764 = vsub.s32 %v471, %v763
    %v765 = vrot.slane %v700, %v764
    %v766 = vsel %vm476, %v765, %v761
    %v767 = vlaneseq
    %v768 = vshrl.u32 %v767, 7
    %v769 = vsub.s32 %v466, %v768
    %v770 = vrot.slane %v703, %v769
    %v771 = vlaneseq
    %v772 = vshrl.u32 %v771, 7
    %v773 = vsub.s32 %v471, %v772
    %v774 = vrot.slane %v706, %v773
    %v775 = vsel %vm476, %v774, %v770
    %v776 = vlaneseq
    %v777 = vshrl.u32 %v776, 7
    %v778 = vsub.s32 %v466, %v777
    %v779 = vrot.slane %v709, %v778
    %v780 = vlaneseq
    %v781 = vshrl.u32 %v780, 7
    %v782 = vsub.s32 %v471, %v781
    %v783 = vrot.slane %v712, %v782
    %v784 = vsel %vm476, %v783, %v779
    %v785 = vsel %vm541, %v730, %v721
    %v786 = vsel %vm543, %v739, %v785
    %v787 = vsel %vm545, %v748, %v786
    %v788 = vsel %vm547, %v757, %v787
    %v789 = vsel %vm549, %v766, %v788
    %v790 = vsel %vm551, %v775, %v789
    %v791 = vsel %vm553, %v784, %v790
    %v793 = vsel %vm556, %v791, 0.0
    %794 = vadd.xlane.f32.xlu0 %v793
    %v795 = vpop.xlane.xlu0 %794
    %v797 = vlaneseq
    %v798 = vshrl.u32 %v797, 7
    %v799 = vsub.s32 0, %v798
    %v800 = vrot.slane %v795, %v799
    %v801 = vlaneseq
    %v802 = vshrl.u32 %v801, 7
    %v803 = vsub.s32 1, %v802
    %v804 = vrot.slane %v795, %v803
    %v805 = vlaneseq
    %v806 = vshrl.u32 %v805, 7
    %v807 = vsub.s32 2, %v806
    %v808 = vrot.slane %v795, %v807
    %v809 = vlaneseq
    %v810 = vshrl.u32 %v809, 7
    %v811 = vsub.s32 3, %v810
    %v812 = vrot.slane %v795, %v811
    %v813 = vlaneseq
    %v814 = vshrl.u32 %v813, 7
    %v815 = vsub.s32 4, %v814
    %v816 = vrot.slane %v795, %v815
    %v817 = vlaneseq
    %v818 = vshrl.u32 %v817, 7
    %v819 = vsub.s32 5, %v818
    %v820 = vrot.slane %v795, %v819
    %v821 = vlaneseq
    %v822 = vshrl.u32 %v821, 7
    %v823 = vsub.s32 6, %v822
    %v824 = vrot.slane %v795, %v823
    %v825 = vlaneseq
    %v826 = vshrl.u32 %v825, 7
    %v827 = vsub.s32 7, %v826
    %v828 = vrot.slane %v795, %v827
    %v837 = vrcp.pop %v800
    %v838 = vmul.f32 %v618, %v837
    %v839 = vmul.f32 %v620, %v837
    %v840 = vrcp.pop %v804
    %v841 = vmul.f32 %v622, %v840
    %v842 = vmul.f32 %v624, %v840
    %v843 = vrcp.pop %v808
    %v844 = vmul.f32 %v626, %v843
    %v845 = vmul.f32 %v628, %v843
    %v846 = vrcp.pop %v812
    %v847 = vmul.f32 %v630, %v846
    %v848 = vmul.f32 %v632, %v846
    %v849 = vrcp.pop %v816
    %v850 = vmul.f32 %v634, %v849
    %v851 = vmul.f32 %v636, %v849
    %v852 = vrcp.pop %v820
    %v853 = vmul.f32 %v638, %v852
    %v854 = vmul.f32 %v640, %v852
    %v855 = vrcp.pop %v824
    %v856 = vmul.f32 %v642, %v855
    %v857 = vmul.f32 %v644, %v855
    %v858 = vrcp.pop %v828
    %v859 = vmul.f32 %v646, %v858
    %v860 = vmul.f32 %v648, %v858
    %877 = vset.pattern.permute.xlu0 0
    %878 = vperm.xlu0 %877, %v838
    %v879 = vpop.permute.xlu0 %878
    %880 = vset.pattern.permute.xlu0 0
    %881 = vperm.xlu0 %880, %v839
    %v882 = vpop.permute.xlu0 %881
    %883 = vset.pattern.permute.xlu0 0
    %884 = vperm.xlu0 %883, %v841
    %v885 = vpop.permute.xlu0 %884
    %886 = vset.pattern.permute.xlu0 0
    %887 = vperm.xlu0 %886, %v842
    %v888 = vpop.permute.xlu0 %887
    %889 = vset.pattern.permute.xlu0 0
    %890 = vperm.xlu0 %889, %v844
    %v891 = vpop.permute.xlu0 %890
    %892 = vset.pattern.permute.xlu0 0
    %893 = vperm.xlu0 %892, %v845
    %v894 = vpop.permute.xlu0 %893
    %895 = vset.pattern.permute.xlu0 0
    %896 = vperm.xlu0 %895, %v847
    %v897 = vpop.permute.xlu0 %896
    %898 = vset.pattern.permute.xlu0 0
    %899 = vperm.xlu0 %898, %v848
    %v900 = vpop.permute.xlu0 %899
    %901 = vset.pattern.permute.xlu0 0
    %902 = vperm.xlu0 %901, %v850
    %v903 = vpop.permute.xlu0 %902
    %904 = vset.pattern.permute.xlu0 0
    %905 = vperm.xlu0 %904, %v851
    %v906 = vpop.permute.xlu0 %905
    %907 = vset.pattern.permute.xlu0 0
    %908 = vperm.xlu0 %907, %v853
    %v909 = vpop.permute.xlu0 %908
    %910 = vset.pattern.permute.xlu0 0
    %911 = vperm.xlu0 %910, %v854
    %v912 = vpop.permute.xlu0 %911
    %913 = vset.pattern.permute.xlu0 0
    %914 = vperm.xlu0 %913, %v856
    %v915 = vpop.permute.xlu0 %914
    %916 = vset.pattern.permute.xlu0 0
    %917 = vperm.xlu0 %916, %v857
    %v918 = vpop.permute.xlu0 %917
    %919 = vset.pattern.permute.xlu0 0
    %920 = vperm.xlu0 %919, %v859
    %v921 = vpop.permute.xlu0 %920
    %922 = vset.pattern.permute.xlu0 0
    %923 = vperm.xlu0 %922, %v860
    %v924 = vpop.permute.xlu0 %923
    %v925 = vlaneseq
    %v926 = vshrl.u32 %v925, 7
    %v927 = vsub.s32 %v466, %v926
    %v928 = vrot.slane %v879, %v927
    %v929 = vlaneseq
    %v930 = vshrl.u32 %v929, 7
    %v931 = vsub.s32 %v471, %v930
    %v932 = vrot.slane %v882, %v931
    %v933 = vsel %vm476, %v932, %v928
    %v934 = vlaneseq
    %v935 = vshrl.u32 %v934, 7
    %v936 = vsub.s32 %v466, %v935
    %v937 = vrot.slane %v885, %v936
    %v938 = vlaneseq
    %v939 = vshrl.u32 %v938, 7
    %v940 = vsub.s32 %v471, %v939
    %v941 = vrot.slane %v888, %v940
    %v942 = vsel %vm476, %v941, %v937
    %v943 = vlaneseq
    %v944 = vshrl.u32 %v943, 7
    %v945 = vsub.s32 %v466, %v944
    %v946 = vrot.slane %v891, %v945
    %v947 = vlaneseq
    %v948 = vshrl.u32 %v947, 7
    %v949 = vsub.s32 %v471, %v948
    %v950 = vrot.slane %v894, %v949
    %v951 = vsel %vm476, %v950, %v946
    %v952 = vlaneseq
    %v953 = vshrl.u32 %v952, 7
    %v954 = vsub.s32 %v466, %v953
    %v955 = vrot.slane %v897, %v954
    %v956 = vlaneseq
    %v957 = vshrl.u32 %v956, 7
    %v958 = vsub.s32 %v471, %v957
    %v959 = vrot.slane %v900, %v958
    %v960 = vsel %vm476, %v959, %v955
    %v961 = vlaneseq
    %v962 = vshrl.u32 %v961, 7
    %v963 = vsub.s32 %v466, %v962
    %v964 = vrot.slane %v903, %v963
    %v965 = vlaneseq
    %v966 = vshrl.u32 %v965, 7
    %v967 = vsub.s32 %v471, %v966
    %v968 = vrot.slane %v906, %v967
    %v969 = vsel %vm476, %v968, %v964
    %v970 = vlaneseq
    %v971 = vshrl.u32 %v970, 7
    %v972 = vsub.s32 %v466, %v971
    %v973 = vrot.slane %v909, %v972
    %v974 = vlaneseq
    %v975 = vshrl.u32 %v974, 7
    %v976 = vsub.s32 %v471, %v975
    %v977 = vrot.slane %v912, %v976
    %v978 = vsel %vm476, %v977, %v973
    %v979 = vlaneseq
    %v980 = vshrl.u32 %v979, 7
    %v981 = vsub.s32 %v466, %v980
    %v982 = vrot.slane %v915, %v981
    %v983 = vlaneseq
    %v984 = vshrl.u32 %v983, 7
    %v985 = vsub.s32 %v471, %v984
    %v986 = vrot.slane %v918, %v985
    %v987 = vsel %vm476, %v986, %v982
    %v988 = vlaneseq
    %v989 = vshrl.u32 %v988, 7
    %v990 = vsub.s32 %v466, %v989
    %v991 = vrot.slane %v921, %v990
    %v992 = vlaneseq
    %v993 = vshrl.u32 %v992, 7
    %v994 = vsub.s32 %v471, %v993
    %v995 = vrot.slane %v924, %v994
    %v996 = vsel %vm476, %v995, %v991
    %v997 = vsel %vm541, %v942, %v933
    %v998 = vsel %vm543, %v951, %v997
    %v999 = vsel %vm545, %v960, %v998
    %v1000 = vsel %vm547, %v969, %v999
    %v1001 = vsel %vm549, %v978, %v1000
    %v1002 = vsel %vm551, %v987, %v1001
    %v1003 = vsel %vm553, %v996, %v1002
    %1005 = vst.msk [vmem:[#allocation9] sm:$0xff] %vm556, %v1003
    %v1006 = vunpack.c.l.bf16 %v61
    %v1007 = vunpack.c.l.bf16 %v62
    %v1008 = vunpack.c.l.bf16 %v63
    %v1009 = vunpack.c.l.bf16 %v64
    %v1010 = vunpack.c.l.bf16 %v65
    %v1011 = vunpack.c.l.bf16 %v66
    %v1012 = vunpack.c.l.bf16 %v67
    %v1013 = vunpack.c.l.bf16 %v68
    %v1014 = vunpack.c.l.bf16 %v69
    %v1015 = vunpack.c.l.bf16 %v70
    %v1016 = vunpack.c.l.bf16 %v71
    %v1017 = vunpack.c.l.bf16 %v72
    %v1018 = vunpack.c.l.bf16 %v73
    %v1019 = vunpack.c.l.bf16 %v74
    %v1020 = vunpack.c.l.bf16 %v75
    %v1021 = vunpack.c.l.bf16 %v76
    %v1038 = vmul.f32 %v1006, %v879
    %v1039 = vmul.f32 %v1007, %v882
    %v1040 = vmul.f32 %v1008, %v885
    %v1041 = vmul.f32 %v1009, %v888
    %v1042 = vmul.f32 %v1010, %v891
    %v1043 = vmul.f32 %v1011, %v894
    %v1044 = vmul.f32 %v1012, %v897
    %v1045 = vmul.f32 %v1013, %v900
    %v1046 = vmul.f32 %v1014, %v903
    %v1047 = vmul.f32 %v1015, %v906
    %v1048 = vmul.f32 %v1016, %v909
    %v1049 = vmul.f32 %v1017, %v912
    %v1050 = vmul.f32 %v1018, %v915
    %v1051 = vmul.f32 %v1019, %v918
    %v1052 = vmul.f32 %v1020, %v921
    %v1053 = vmul.f32 %v1021, %v924
    %v1054 = vsel %vm134, %v1038, 0.0
    %v1055 = vsel %vm134, %v1039, 0.0
    %v1056 = vadd.f32 %v1054, %v1055
    %v1057 = vrot.slane %v1056, 4
    %v1058 = vadd.f32 %v1056, %v1057
    %v1059 = vrot.slane %v1058, 2
    %v1060 = vadd.f32 %v1058, %v1059
    %v1061 = vrot.slane %v1060, 1
    %v1062 = vadd.f32 %v1060, %v1061
    %v1063 = vsel %vm134, %v1040, 0.0
    %v1064 = vsel %vm134, %v1041, 0.0
    %v1065 = vadd.f32 %v1063, %v1064
    %v1066 = vrot.slane %v1065, 4
    %v1067 = vadd.f32 %v1065, %v1066
    %v1068 = vrot.slane %v1067, 2
    %v1069 = vadd.f32 %v1067, %v1068
    %v1070 = vrot.slane %v1069, 1
    %v1071 = vadd.f32 %v1069, %v1070
    %v1072 = vsel %vm134, %v1042, 0.0
    %v1073 = vsel %vm134, %v1043, 0.0
    %v1074 = vadd.f32 %v1072, %v1073
    %v1075 = vrot.slane %v1074, 4
    %v1076 = vadd.f32 %v1074, %v1075
    %v1077 = vrot.slane %v1076, 2
    %v1078 = vadd.f32 %v1076, %v1077
    %v1079 = vrot.slane %v1078, 1
    %v1080 = vadd.f32 %v1078, %v1079
    %v1081 = vsel %vm134, %v1044, 0.0
    %v1082 = vsel %vm134, %v1045, 0.0
    %v1083 = vadd.f32 %v1081, %v1082
    %v1084 = vrot.slane %v1083, 4
    %v1085 = vadd.f32 %v1083, %v1084
    %v1086 = vrot.slane %v1085, 2
    %v1087 = vadd.f32 %v1085, %v1086
    %v1088 = vrot.slane %v1087, 1
    %v1089 = vadd.f32 %v1087, %v1088
    %v1090 = vsel %vm134, %v1046, 0.0
    %v1091 = vsel %vm134, %v1047, 0.0
    %v1092 = vadd.f32 %v1090, %v1091
    %v1093 = vrot.slane %v1092, 4
    %v1094 = vadd.f32 %v1092, %v1093
    %v1095 = vrot.slane %v1094, 2
    %v1096 = vadd.f32 %v1094, %v1095
    %v1097 = vrot.slane %v1096, 1
    %v1098 = vadd.f32 %v1096, %v1097
    %v1099 = vsel %vm134, %v1048, 0.0
    %v1100 = vsel %vm134, %v1049, 0.0
    %v1101 = vadd.f32 %v1099, %v1100
    %v1102 = vrot.slane %v1101, 4
    %v1103 = vadd.f32 %v1101, %v1102
    %v1104 = vrot.slane %v1103, 2
    %v1105 = vadd.f32 %v1103, %v1104
    %v1106 = vrot.slane %v1105, 1
    %v1107 = vadd.f32 %v1105, %v1106
    %v1108 = vsel %vm134, %v1050, 0.0
    %v1109 = vsel %vm134, %v1051, 0.0
    %v1110 = vadd.f32 %v1108, %v1109
    %v1111 = vrot.slane %v1110, 4
    %v1112 = vadd.f32 %v1110, %v1111
    %v1113 = vrot.slane %v1112, 2
    %v1114 = vadd.f32 %v1112, %v1113
    %v1115 = vrot.slane %v1114, 1
    %v1116 = vadd.f32 %v1114, %v1115
    %v1117 = vsel %vm134, %v1052, 0.0
    %v1118 = vsel %vm134, %v1053, 0.0
    %v1119 = vadd.f32 %v1117, %v1118
    %v1120 = vrot.slane %v1119, 4
    %v1121 = vadd.f32 %v1119, %v1120
    %v1122 = vrot.slane %v1121, 2
    %v1123 = vadd.f32 %v1121, %v1122
    %v1124 = vrot.slane %v1123, 1
    %v1125 = vadd.f32 %v1123, %v1124
    %v1134 = vsel %vm541, %v1071, %v1062
    %v1135 = vsel %vm543, %v1080, %v1134
    %v1136 = vsel %vm545, %v1089, %v1135
    %v1137 = vsel %vm547, %v1098, %v1136
    %v1138 = vsel %vm549, %v1107, %v1137
    %v1139 = vsel %vm551, %v1116, %v1138
    %v1140 = vsel %vm553, %v1125, %v1139
    %1142 = vst.msk [vmem:[#allocation8] sm:$0xff] %vm134, %v1140
    // Predicated region
    $region30: #{tpu_custom_call.1} parent=1 // pred_check
      _
    $region31: #{tpu_custom_call.1} parent=1 // pred_check_branch
      %1144 = sbr.rel (0) target = $region33
    $region32: #{tpu_custom_call.1} parent=1 // pred_region
      %s1146 = ssub.s32 128, 128
      %1147 = vsyncadd [#allocation4], %s1146
      %s1149 = sshll.u32 [#allocation8], 4
      %s1150 = int_to_ptr.vmem [resolvable:$true] %s1149
      %1152 = dma.vmem_to_hbm [thread:$0]  %s1150, 128, %s4, [#allocation4]
    $region33: #{tpu_custom_call.1} parent=1 // pred_fallthru
      _
    // Predicated region
    $region34: #{tpu_custom_call.1} parent=1 // pred_check
      _
    $region35: #{tpu_custom_call.1} parent=1 // pred_check_branch
      %1154 = sbr.rel (0) target = $region37
    $region36: #{tpu_custom_call.1} parent=1 // pred_region
      %s1156 = ssub.s32 128, 128
      %1157 = vsyncadd [#allocation10], %s1156
      %s1159 = sshll.u32 [#allocation9], 4
      %s1160 = int_to_ptr.vmem [resolvable:$true] %s1159
      %1162 = dma.vmem_to_hbm [thread:$0]  %s1160, 128, %s5, [#allocation10]
    $region37: #{tpu_custom_call.1} parent=1 // pred_fallthru
      _
    // Predicated region
    $region38: #{tpu_custom_call.1} parent=1 // pred_check
      _
    $region39: #{tpu_custom_call.1} parent=1 // pred_check_branch
      %1164 = sbr.rel (0) target = $region41
    $region40: #{tpu_custom_call.1} parent=1 // pred_region
      %1165 = dma.done [#allocation4], 128
    $region41: #{tpu_custom_call.1} parent=1 // pred_fallthru
      _
    // Predicated region
    $region42: #{tpu_custom_call.1} parent=1 // pred_check
      _
    $region43: #{tpu_custom_call.1} parent=1 // pred_check_branch
      %1167 = sbr.rel (0) target = $region45
    $region44: #{tpu_custom_call.1} parent=1 // pred_region
      %1168 = dma.done [#allocation10], 128
    $region45: #{tpu_custom_call.1} parent=1 // pred_fallthru
      _
    %1169 = vsyncpa [#allocation3], 1
    %1170 = vsyncpa [#allocation6], 1
    %1171 = vsyncpa [#allocation4], 1
    %1172 = vsyncpa [#allocation10], 1

// kernel: tpu_custom_call.1
$region0: #{tpu_custom_call.1}
  #allocation0 [shape = 'u32[]', space=smem, size = 0x4, offset = 0x4, fixed_abs, tag = 'smem constant byte address 0x4 - core index']
  #allocation1 [shape = 'u32[144,128]{1,0:T(1,128)}', space=vmem, size = 0x12000, scoped, tag = 'internal scratch']
  %s0 = inlined_call_operand.hbm [shape: bf16[8,16,32], index: 0, kind: input, shape index: {}]
  %s1 = inlined_call_operand.hbm [shape: f32[8,32], index: 1, kind: input, shape index: {}]
  %s2 = inlined_call_operand.hbm [shape: bf16[32,32], index: 2, kind: input, shape index: {}]
  %s3 = inlined_call_operand.vmem [shape: f32[1,32], index: 3, kind: input, shape index: {}]
  %s4 = inlined_call_operand.hbm [shape: f32[8,32], index: 4, kind: output, shape index: {0}]
  %s5 = inlined_call_operand.hbm [shape: f32[8,16], index: 5, kind: output, shape index: {1}]
  %6 = xla_tuple %s4, %s5
  %s7 = sld [smem:[#allocation0]]
  $region46: #{tpu_custom_call.1} parent=0
    _
  %s9 = ssub.s32 1, %s7
  %s10 = scalar_select 0, %s9, %s7
  $region1: #{tpu_custom_call.1} parent=0
    #allocation2 [shape = 'u8[32768]{0}', space=vmem, size = 0x8000, scoped, tag = 'input window, operand 0, single buffered']
    #allocation3 [shape = 's32[1]{0}', space=sflag, size = 0x4, scoped, tag = 'scoped memory for tpu_custom_call.1']
    #allocation4 [shape = 's32[1]{0}', space=sflag, size = 0x4, scoped, tag = 'scoped memory for tpu_custom_call.1']
    #allocation5 [shape = 'u8[4096]{0}', space=vmem, size = 0x1000, scoped, tag = 'input window, operand 1, single buffered']
    #allocation6 [shape = 's32[1]{0}', space=sflag, size = 0x4, scoped, tag = 'scoped memory for tpu_custom_call.1']
    #allocation7 [shape = 'u8[8192]{0}', space=vmem, size = 0x2000, scoped, tag = 'input window, operand 2, single buffered']
    #allocation8 [shape = 'u8[4096]{0}', space=vmem, size = 0x1000, scoped, tag = 'output window, operand 0, single buffered']
    #allocation9 [shape = 'u8[4096]{0}', space=vmem, size = 0x1000, scoped, tag = 'output window, operand 1, single buffered']
    #allocation10 [shape = 's32[1]{0}', space=sflag, size = 0x4, scoped, tag = 'scoped memory for tpu_custom_call.1']
    %11 = vsyncpa [#allocation3], 0
    %12 = vsyncpa [#allocation6], 0
    %13 = vsyncpa [#allocation4], 0
    %14 = vsyncpa [#allocation10], 0
    // Predicated region
    $region2: #{tpu_custom_call.1} parent=1 // pred_check
      _
    $region3: #{tpu_custom_call.1} parent=1 // pred_check_branch
      %16 = sbr.rel (0) target = $region5
    $region4: #{tpu_custom_call.1} parent=1 // pred_region
      %s18 = ssub.s32 1024, 1024
      %19 = vsyncadd [#allocation3], %s18
      %s20 = sshll.u32 [#allocation2], 4
      %s21 = int_to_ptr.vmem [resolvable:$true] %s20
      %26 = dma.hbm_to_vmem [thread:$0]  %s0, 1024, %s21, [#allocation3], 64, 64, 4
    $region5: #{tpu_custom_call.1} parent=1 // pred_fallthru
      _
    // Predicated region
    $region6: #{tpu_custom_call.1} parent=1 // pred_check
      _
    $region7: #{tpu_custom_call.1} parent=1 // pred_check_branch
      %28 = sbr.rel (0) target = $region9
    $region8: #{tpu_custom_call.1} parent=1 // pred_region
      %s30 = ssub.s32 128, 128
      %31 = vsyncadd [#allocation6], %s30
      %s33 = sshll.u32 [#allocation5], 4
      %s34 = int_to_ptr.vmem [resolvable:$true] %s33
      %36 = dma.hbm_to_vmem [thread:$0]  %s1, 128, %s34, [#allocation6]
    $region9: #{tpu_custom_call.1} parent=1 // pred_fallthru
      _
    // Predicated region
    $region10: #{tpu_custom_call.1} parent=1 // pred_check
      _
    $region11: #{tpu_custom_call.1} parent=1 // pred_check_branch
      %38 = sbr.rel (0) target = $region13
    $region12: #{tpu_custom_call.1} parent=1 // pred_region
      %s40 = ssub.s32 256, 256
      %41 = vsyncadd [#allocation6], %s40
      %s42 = sshll.u32 [#allocation7], 4
      %s43 = int_to_ptr.vmem [resolvable:$true] %s42
      %48 = dma.hbm_to_vmem [thread:$0]  %s2, 256, %s43, [#allocation6], 64, 64, 4
    $region13: #{tpu_custom_call.1} parent=1 // pred_fallthru
      _
    // Predicated region
    $region14: #{tpu_custom_call.1} parent=1 // pred_check
      _
    $region15: #{tpu_custom_call.1} parent=1 // pred_check_branch
      %50 = sbr.rel (0) target = $region17
    $region16: #{tpu_custom_call.1} parent=1 // pred_region
      _
    $region17: #{tpu_custom_call.1} parent=1 // pred_fallthru
      _
    // Predicated region
    $region18: #{tpu_custom_call.1} parent=1 // pred_check
      _
    $region19: #{tpu_custom_call.1} parent=1 // pred_check_branch
      %52 = sbr.rel (0) target = $region21
    $region20: #{tpu_custom_call.1} parent=1 // pred_region
      %53 = dma.done [#allocation3], 1024
    $region21: #{tpu_custom_call.1} parent=1 // pred_fallthru
      _
    // Predicated region
    $region22: #{tpu_custom_call.1} parent=1 // pred_check
      _
    $region23: #{tpu_custom_call.1} parent=1 // pred_check_branch
      %55 = sbr.rel (0) target = $region25
    $region24: #{tpu_custom_call.1} parent=1 // pred_region
      %56 = dma.done [#allocation6], 128
    $region25: #{tpu_custom_call.1} parent=1 // pred_fallthru
      _
    // Predicated region
    $region26: #{tpu_custom_call.1} parent=1 // pred_check
      _
    $region27: #{tpu_custom_call.1} parent=1 // pred_check_branch
      %58 = sbr.rel (0) target = $region29
    $region28: #{tpu_custom_call.1} parent=1 // pred_region
      %59 = dma.done [#allocation6], 256
    $region29: #{tpu_custom_call.1} parent=1 // pred_fallthru
      _
    %v61 = vld [vmem:[#allocation2] sm:$0xf]
    %v62 = vld [vmem:[#allocation2 + $0x4] sm:$0xf]
    %v63 = vld [vmem:[#allocation2 + $0x8] sm:$0xf]
    %v64 = vld [vmem:[#allocation2 + $0xc] sm:$0xf]
    %v65 = vld [vmem:[#allocation2 + $0x10] sm:$0xf]
    %v66 = vld [vmem:[#allocation2 + $0x14] sm:$0xf]
    %v67 = vld [vmem:[#allocation2 + $0x18] sm:$0xf]
    %v68 = vld [vmem:[#allocation2 + $0x1c] sm:$0xf]
    %v69 = vld [vmem:[#allocation2 + $0x20] sm:$0xf]
    %v70 = vld [vmem:[#allocation2 + $0x24] sm:$0xf]
    %v71 = vld [vmem:[#allocation2 + $0x28] sm:$0xf]
    %v72 = vld [vmem:[#allocation2 + $0x2c] sm:$0xf]
    %v73 = vld [vmem:[#allocation2 + $0x30] sm:$0xf]
    %v74 = vld [vmem:[#allocation2 + $0x34] sm:$0xf]
    %v75 = vld [vmem:[#allocation2 + $0x38] sm:$0xf]
    %v76 = vld [vmem:[#allocation2 + $0x3c] sm:$0xf]
    %v77 = vld [vmem:[#allocation5] sm:$0xff]
    %v78 = vld [vmem:[#allocation7] sm:$0xf]
    %v79 = vld [vmem:[#allocation7 + $0x4] sm:$0xf]
    %v80 = vld [vmem:[#allocation7 + $0x8] sm:$0xf]
    %v81 = vld [vmem:[#allocation7 + $0xc] sm:$0xf]
    %v98 = vunpack.c.l.b16 %v61
    %v99 = vunpack.c.l.b16 %v62
    %v100 = vunpack.c.l.b16 %v63
    %v101 = vunpack.c.l.b16 %v64
    %v102 = vunpack.c.l.b16 %v65
    %v103 = vunpack.c.l.b16 %v66
    %v104 = vunpack.c.l.b16 %v67
    %v105 = vunpack.c.l.b16 %v68
    %v106 = vunpack.c.l.b16 %v69
    %v107 = vunpack.c.l.b16 %v70
    %v108 = vunpack.c.l.b16 %v71
    %v109 = vunpack.c.l.b16 %v72
    %v110 = vunpack.c.l.b16 %v73
    %v111 = vunpack.c.l.b16 %v74
    %v112 = vunpack.c.l.b16 %v75
    %v113 = vunpack.c.l.b16 %v76
    %v114 = vpack.c.b16 %v99, %v98
    %v115 = vpack.c.b16 %v101, %v100
    %v116 = vpack.c.b16 %v103, %v102
    %v117 = vpack.c.b16 %v105, %v104
    %v118 = vpack.c.b16 %v107, %v106
    %v119 = vpack.c.b16 %v109, %v108
    %v120 = vpack.c.b16 %v111, %v110
    %v121 = vpack.c.b16 %v113, %v112
    %v126 = vunpack.c.l.b16 %v78
    %v127 = vunpack.c.l.b16 %v79
    %v128 = vunpack.c.l.b16 %v80
    %v129 = vunpack.c.l.b16 %v81
    %v130 = vpack.c.b16 %v127, %v126
    %v131 = vpack.c.b16 %v129, %v128
    %vm134 = vcmask 261120
    %v136 = vsel %vm134, %v114, 0
    %v139 = vsel %vm134, %v115, 0
    %v142 = vsel %vm134, %v116, 0
    %v145 = vsel %vm134, %v117, 0
    %v148 = vsel %vm134, %v118, 0
    %v151 = vsel %vm134, %v119, 0
    %v154 = vsel %vm134, %v120, 0
    %v157 = vsel %vm134, %v121, 0
    %159 = vmatprep.subr.bf16.mxu0 0
    %160 = vmatpush1.bf16.msra.mxu0 %v130
    %161 = vmatprep.subr.bf16.mxu0 0
    %162 = vmatpush1.bf16.msra.mxu0 %v131
    %163 = vmatprep.subr.bf16.mxu0 0
    %164 = vmatpush1.bf16.msra.mxu0 0
    %165 = vmatprep.subr.bf16.mxu0 0
    %166 = vmatpush1.bf16.msra.mxu0 0
    %167 = vmatprep.subr.bf16.mxu0 0
    %168 = vmatpush1.bf16.msra.mxu0 0
    %169 = vmatprep.subr.bf16.mxu0 0
    %170 = vmatpush1.bf16.msra.mxu0 0
    %171 = vmatprep.subr.bf16.mxu0 0
    %172 = vmatpush1.bf16.msra.mxu0 0
    %173 = vmatprep.subr.bf16.mxu0 0
    %174 = vmatpush1.bf16.msra.mxu0 0
    %175 = vmatprep.subr.bf16.mxu0 0
    %176 = vmatpush1.bf16.msra.mxu0 0
    %177 = vmatprep.subr.bf16.mxu0 0
    %178 = vmatpush1.bf16.msra.mxu0 0
    %179 = vmatprep.subr.bf16.mxu0 0
    %180 = vmatpush1.bf16.msra.mxu0 0
    %181 = vmatprep.subr.bf16.mxu0 0
    %182 = vmatpush1.bf16.msra.mxu0 0
    %183 = vmatprep.subr.bf16.mxu0 0
    %184 = vmatpush1.bf16.msra.mxu0 0
    %185 = vmatprep.subr.bf16.mxu0 0
    %186 = vmatpush1.bf16.msra.mxu0 0
    %187 = vmatprep.subr.bf16.mxu0 0
    %188 = vmatpush1.bf16.msra.mxu0 0
    %189 = vmatprep.subr.bf16.mxu0 0
    %190 = vmatpush1.bf16.msra.mxu0 0
    %191 = vmatprep.mubr.bf16.mxu0 0
    %192 = vmatmul.mubr.bf16.gmra.mrb[0].mxu0 %v136
    %v193 = vpop.f32.mrb[0].mxu0
    %v194 = vadd.f32 0.0, %v193
    %v195 = vpop.f32.mrb[0].mxu0
    %v196 = vpop.f32.mrb[0].mxu0
    %v197 = vadd.f32 0.0, %v196
    %v198 = vpop.f32.mrb[0].mxu0
    %199 = vmatprep.mubr.bf16.mxu0 0
    %200 = vmatmul.mubr.bf16.gmra.mrb[0].mxu0 %v139
    %v201 = vpop.f32.mrb[0].mxu0
    %v202 = vadd.f32 0.0, %v201
    %v203 = vpop.f32.mrb[0].mxu0
    %v204 = vpop.f32.mrb[0].mxu0
    %v205 = vadd.f32 0.0, %v204
    %v206 = vpop.f32.mrb[0].mxu0
    %207 = vmatprep.mubr.bf16.mxu0 0
    %208 = vmatmul.mubr.bf16.gmra.mrb[0].mxu0 %v142
    %v209 = vpop.f32.mrb[0].mxu0
    %v210 = vadd.f32 0.0, %v209
    %v211 = vpop.f32.mrb[0].mxu0
    %v212 = vpop.f32.mrb[0].mxu0
    %v213 = vadd.f32 0.0, %v212
    %v214 = vpop.f32.mrb[0].mxu0
    %215 = vmatprep.mubr.bf16.mxu0 0
    %216 = vmatmul.mubr.bf16.gmra.mrb[0].mxu0 %v145
    %v217 = vpop.f32.mrb[0].mxu0
    %v218 = vadd.f32 0.0, %v217
    %v219 = vpop.f32.mrb[0].mxu0
    %v220 = vpop.f32.mrb[0].mxu0
    %v221 = vadd.f32 0.0, %v220
    %v222 = vpop.f32.mrb[0].mxu0
    %223 = vmatprep.mubr.bf16.mxu0 0
    %224 = vmatmul.mubr.bf16.gmra.mrb[0].mxu0 %v148
    %v225 = vpop.f32.mrb[0].mxu0
    %v226 = vadd.f32 0.0, %v225
    %v227 = vpop.f32.mrb[0].mxu0
    %v228 = vpop.f32.mrb[0].mxu0
    %v229 = vadd.f32 0.0, %v228
    %v230 = vpop.f32.mrb[0].mxu0
    %231 = vmatprep.mubr.bf16.mxu0 0
    %232 = vmatmul.mubr.bf16.gmra.mrb[0].mxu0 %v151
    %v233 = vpop.f32.mrb[0].mxu0
    %v234 = vadd.f32 0.0, %v233
    %v235 = vpop.f32.mrb[0].mxu0
    %v236 = vpop.f32.mrb[0].mxu0
    %v237 = vadd.f32 0.0, %v236
    %v238 = vpop.f32.mrb[0].mxu0
    %239 = vmatprep.mubr.bf16.mxu0 0
    %240 = vmatmul.mubr.bf16.gmra.mrb[0].mxu0 %v154
    %v241 = vpop.f32.mrb[0].mxu0
    %v242 = vadd.f32 0.0, %v241
    %v243 = vpop.f32.mrb[0].mxu0
    %v244 = vpop.f32.mrb[0].mxu0
    %v245 = vadd.f32 0.0, %v244
    %v246 = vpop.f32.mrb[0].mxu0
    %247 = vmatprep.mubr.bf16.mxu0 0
    %248 = vmatmul.mubr.bf16.gmra.mrb[0].mxu0 %v157
    %v249 = vpop.f32.mrb[0].mxu0
    %v250 = vadd.f32 0.0, %v249
    %v251 = vpop.f32.mrb[0].mxu0
    %v252 = vpop.f32.mrb[0].mxu0
    %v253 = vadd.f32 0.0, %v252
    %v254 = vpop.f32.mrb[0].mxu0
    %255 = vdwg.mxu0
    %v257 = vcombine.high %v77, %v77
    %v259 = vunpack.c.l.s4 1966171168
    %v260 = vunpack.c.0.s8 %v259
    %v261 = vlaneseq
    %v262 = vshrl.u32 %v261, 7
    %v263 = vsub.s32 %v260, %v262
    %v264 = vrot.slane %v77, %v263
    %v266 = vunpack.c.l.s4 1966171168
    %v267 = vunpack.c.0.s8 %v266
    %v268 = vlaneseq
    %v269 = vshrl.u32 %v268, 7
    %v270 = vsub.s32 %v267, %v269
    %v271 = vrot.slane %v257, %v270
    %v272 = vcombine.high %v264, %v264
    %v273 = vcombine.high %v271, %v271
    %v275 = vunpack.c.l.s4 1966171168
    %v276 = vunpack.c.0.s8 %v275
    %v277 = vlaneseq
    %v278 = vshrl.u32 %v277, 7
    %v279 = vsub.s32 %v276, %v278
    %v280 = vrot.slane %v264, %v279
    %v282 = vunpack.c.l.s4 1966171168
    %v283 = vunpack.c.0.s8 %v282
    %v284 = vlaneseq
    %v285 = vshrl.u32 %v284, 7
    %v286 = vsub.s32 %v283, %v285
    %v287 = vrot.slane %v271, %v286
    %v289 = vunpack.c.l.s4 1966171168
    %v290 = vunpack.c.0.s8 %v289
    %v291 = vlaneseq
    %v292 = vshrl.u32 %v291, 7
    %v293 = vsub.s32 %v290, %v292
    %v294 = vrot.slane %v272, %v293
    %v296 = vunpack.c.l.s4 1966171168
    %v297 = vunpack.c.0.s8 %v296
    %v298 = vlaneseq
    %v299 = vshrl.u32 %v298, 7
    %v300 = vsub.s32 %v297, %v299
    %v301 = vrot.slane %v273, %v300
    %v302 = vcombine.high %v280, %v280
    %v303 = vcombine.high %v287, %v287
    %v304 = vcombine.high %v294, %v294
    %v305 = vcombine.high %v301, %v301
    %v306 = vlaneseq
    %v307 = vshrl.u32 %v306, 7
    %v308 = vsub.s32 0, %v307
    %v309 = vrot.slane %v280, %v308
    %v310 = vlaneseq
    %v311 = vshrl.u32 %v310, 7
    %v312 = vsub.s32 0, %v311
    %v313 = vrot.slane %v294, %v312
    %v314 = vlaneseq
    %v315 = vshrl.u32 %v314, 7
    %v316 = vsub.s32 0, %v315
    %v317 = vrot.slane %v302, %v316
    %v318 = vlaneseq
    %v319 = vshrl.u32 %v318, 7
    %v320 = vsub.s32 0, %v319
    %v321 = vrot.slane %v304, %v320
    %v322 = vlaneseq
    %v323 = vshrl.u32 %v322, 7
    %v324 = vsub.s32 0, %v323
    %v325 = vrot.slane %v287, %v324
    %v326 = vlaneseq
    %v327 = vshrl.u32 %v326, 7
    %v328 = vsub.s32 0, %v327
    %v329 = vrot.slane %v301, %v328
    %v330 = vlaneseq
    %v331 = vshrl.u32 %v330, 7
    %v332 = vsub.s32 0, %v331
    %v333 = vrot.slane %v303, %v332
    %v334 = vlaneseq
    %v335 = vshrl.u32 %v334, 7
    %v336 = vsub.s32 0, %v335
    %v337 = vrot.slane %v305, %v336
    %v346 = vadd.f32 %v194, %v309
    %v347 = vadd.f32 %v197, %v309
    %v348 = vadd.f32 %v202, %v313
    %v349 = vadd.f32 %v205, %v313
    %v350 = vadd.f32 %v210, %v317
    %v351 = vadd.f32 %v213, %v317
    %v352 = vadd.f32 %v218, %v321
    %v353 = vadd.f32 %v221, %v321
    %v354 = vadd.f32 %v226, %v325
    %v355 = vadd.f32 %v229, %v325
    %v356 = vadd.f32 %v234, %v329
    %v357 = vadd.f32 %v237, %v329
    %v358 = vadd.f32 %v242, %v333
    %v359 = vadd.f32 %v245, %v333
    %v360 = vadd.f32 %v250, %v337
    %v361 = vadd.f32 %v253, %v337
    %v362 = vmax.f32 %v346, 0.0
    %v363 = vmax.f32 %v347, 0.0
    %v364 = vmax.f32 %v348, 0.0
    %v365 = vmax.f32 %v349, 0.0
    %v366 = vmax.f32 %v350, 0.0
    %v367 = vmax.f32 %v351, 0.0
    %v368 = vmax.f32 %v352, 0.0
    %v369 = vmax.f32 %v353, 0.0
    %v370 = vmax.f32 %v354, 0.0
    %v371 = vmax.f32 %v355, 0.0
    %v372 = vmax.f32 %v356, 0.0
    %v373 = vmax.f32 %v357, 0.0
    %v374 = vmax.f32 %v358, 0.0
    %v375 = vmax.f32 %v359, 0.0
    %v376 = vmax.f32 %v360, 0.0
    %v377 = vmax.f32 %v361, 0.0
    %v378 = vld [vmem:[%s3] sm:$0x1]
    %v380 = vlaneseq
    %v381 = vshrl.u32 %v380, 7
    %v382 = vsub.s32 0, %v381
    %v383 = vrot.slane %v378, %v382
    %v385 = vmul.f32 %v362, %v383
    %v386 = vmul.f32 %v363, %v383
    %v387 = vmul.f32 %v364, %v383
    %v388 = vmul.f32 %v365, %v383
    %v389 = vmul.f32 %v366, %v383
    %v390 = vmul.f32 %v367, %v383
    %v391 = vmul.f32 %v368, %v383
    %v392 = vmul.f32 %v369, %v383
    %v393 = vmul.f32 %v370, %v383
    %v394 = vmul.f32 %v371, %v383
    %v395 = vmul.f32 %v372, %v383
    %v396 = vmul.f32 %v373, %v383
    %v397 = vmul.f32 %v374, %v383
    %v398 = vmul.f32 %v375, %v383
    %v399 = vmul.f32 %v376, %v383
    %v400 = vmul.f32 %v377, %v383
    %v401 = vsel %vm134, %v385, 0.0
    %402 = vadd.xlane.f32.xlu0 %v401
    %v403 = vpop.xlane.xlu0 %402
    %v404 = vsel %vm134, %v386, 0.0
    %405 = vadd.xlane.f32.xlu0 %v404
    %v406 = vpop.xlane.xlu0 %405
    %v407 = vsel %vm134, %v387, 0.0
    %408 = vadd.xlane.f32.xlu0 %v407
    %v409 = vpop.xlane.xlu0 %408
    %v410 = vsel %vm134, %v388, 0.0
    %411 = vadd.xlane.f32.xlu0 %v410
    %v412 = vpop.xlane.xlu0 %411
    %v413 = vsel %vm134, %v389, 0.0
    %414 = vadd.xlane.f32.xlu0 %v413
    %v415 = vpop.xlane.xlu0 %414
    %v416 = vsel %vm134, %v390, 0.0
    %417 = vadd.xlane.f32.xlu0 %v416
    %v418 = vpop.xlane.xlu0 %417
    %v419 = vsel %vm134, %v391, 0.0
    %420 = vadd.xlane.f32.xlu0 %v419
    %v421 = vpop.xlane.xlu0 %420
    %v422 = vsel %vm134, %v392, 0.0
    %423 = vadd.xlane.f32.xlu0 %v422
    %v424 = vpop.xlane.xlu0 %423
    %v425 = vsel %vm134, %v393, 0.0
    %426 = vadd.xlane.f32.xlu0 %v425
    %v427 = vpop.xlane.xlu0 %426
    %v428 = vsel %vm134, %v394, 0.0
    %429 = vadd.xlane.f32.xlu0 %v428
    %v430 = vpop.xlane.xlu0 %429
    %v431 = vsel %vm134, %v395, 0.0
    %432 = vadd.xlane.f32.xlu0 %v431
    %v433 = vpop.xlane.xlu0 %432
    %v434 = vsel %vm134, %v396, 0.0
    %435 = vadd.xlane.f32.xlu0 %v434
    %v436 = vpop.xlane.xlu0 %435
    %v437 = vsel %vm134, %v397, 0.0
    %438 = vadd.xlane.f32.xlu0 %v437
    %v439 = vpop.xlane.xlu0 %438
    %v440 = vsel %vm134, %v398, 0.0
    %441 = vadd.xlane.f32.xlu0 %v440
    %v442 = vpop.xlane.xlu0 %441
    %v443 = vsel %vm134, %v399, 0.0
    %444 = vadd.xlane.f32.xlu0 %v443
    %v445 = vpop.xlane.xlu0 %444
    %v446 = vsel %vm134, %v400, 0.0
    %447 = vadd.xlane.f32.xlu0 %v446
    %v448 = vpop.xlane.xlu0 %447
    %v465 = vlaneseq
    %v466 = vand.u32 %v465, 127
    %v467 = vlaneseq
    %v468 = vshrl.u32 %v467, 7
    %v469 = vsub.s32 %v466, %v468
    %v470 = vrot.slane %v403, %v469
    %v471 = vadd.s32 %v466, 4294967288
    %v472 = vlaneseq
    %v473 = vshrl.u32 %v472, 7
    %v474 = vsub.s32 %v471, %v473
    %v475 = vrot.slane %v406, %v474
    %vm476 = vcmask 130112
    %v477 = vsel %vm476, %v475, %v470
    %v478 = vlaneseq
    %v479 = vshrl.u32 %v478, 7
    %v480 = vsub.s32 %v466, %v479
    %v481 = vrot.slane %v409, %v480
    %v482 = vlaneseq
    %v483 = vshrl.u32 %v482, 7
    %v484 = vsub.s32 %v471, %v483
    %v485 = vrot.slane %v412, %v484
    %v486 = vsel %vm476, %v485, %v481
    %v487 = vlaneseq
    %v488 = vshrl.u32 %v487, 7
    %v489 = vsub.s32 %v466, %v488
    %v490 = vrot.slane %v415, %v489
    %v491 = vlaneseq
    %v492 = vshrl.u32 %v491, 7
    %v493 = vsub.s32 %v471, %v492
    %v494 = vrot.slane %v418, %v493
    %v495 = vsel %vm476, %v494, %v490
    %v496 = vlaneseq
    %v497 = vshrl.u32 %v496, 7
    %v498 = vsub.s32 %v466, %v497
    %v499 = vrot.slane %v421, %v498
    %v500 = vlaneseq
    %v501 = vshrl.u32 %v500, 7
    %v502 = vsub.s32 %v471, %v501
    %v503 = vrot.slane %v424, %v502
    %v504 = vsel %vm476, %v503, %v499
    %v505 = vlaneseq
    %v506 = vshrl.u32 %v505, 7
    %v507 = vsub.s32 %v466, %v506
    %v508 = vrot.slane %v427, %v507
    %v509 = vlaneseq
    %v510 = vshrl.u32 %v509, 7
    %v511 = vsub.s32 %v471, %v510
    %v512 = vrot.slane %v430, %v511
    %v513 = vsel %vm476, %v512, %v508
    %v514 = vlaneseq
    %v515 = vshrl.u32 %v514, 7
    %v516 = vsub.s32 %v466, %v515
    %v517 = vrot.slane %v433, %v516
    %v518 = vlaneseq
    %v519 = vshrl.u32 %v518, 7
    %v520 = vsub.s32 %v471, %v519
    %v521 = vrot.slane %v436, %v520
    %v522 = vsel %vm476, %v521, %v517
    %v523 = vlaneseq
    %v524 = vshrl.u32 %v523, 7
    %v525 = vsub.s32 %v466, %v524
    %v526 = vrot.slane %v439, %v525
    %v527 = vlaneseq
    %v528 = vshrl.u32 %v527, 7
    %v529 = vsub.s32 %v471, %v528
    %v530 = vrot.slane %v442, %v529
    %v531 = vsel %vm476, %v530, %v526
    %v532 = vlaneseq
    %v533 = vshrl.u32 %v532, 7
    %v534 = vsub.s32 %v466, %v533
    %v535 = vrot.slane %v445, %v534
    %v536 = vlaneseq
    %v537 = vshrl.u32 %v536, 7
    %v538 = vsub.s32 %v471, %v537
    %v539 = vrot.slane %v448, %v538
    %v540 = vsel %vm476, %v539, %v535
    %vm541 = vcmask 1041409
    %v542 = vsel %vm541, %v486, %v477
    %vm543 = vcmask 1042434
    %v544 = vsel %vm543, %v495, %v542
    %vm545 = vcmask 1043459
    %v546 = vsel %vm545, %v504, %v544
    %vm547 = vcmask 1044484
    %v548 = vsel %vm547, %v513, %v546
    %vm549 = vcmask 1045509
    %v550 = vsel %vm549, %v522, %v548
    %vm551 = vcmask 1046534
    %v552 = vsel %vm551, %v531, %v550
    %vm553 = vcmask 1047559
    %v554 = vsel %vm553, %v540, %v552
    %vm556 = vcmask 130048
    %v557 = vsel %vm556, %v554, -inf
    %558 = vmax.xlane.f32.xlu0 %v557
    %v559 = vpop.xlane.xlu0 %558
    %v561 = vlaneseq
    %v562 = vshrl.u32 %v561, 7
    %v563 = vsub.s32 0, %v562
    %v564 = vrot.slane %v559, %v563
    %v565 = vlaneseq
    %v566 = vshrl.u32 %v565, 7
    %v567 = vsub.s32 1, %v566
    %v568 = vrot.slane %v559, %v567
    %v569 = vlaneseq
    %v570 = vshrl.u32 %v569, 7
    %v571 = vsub.s32 2, %v570
    %v572 = vrot.slane %v559, %v571
    %v573 = vlaneseq
    %v574 = vshrl.u32 %v573, 7
    %v575 = vsub.s32 3, %v574
    %v576 = vrot.slane %v559, %v575
    %v577 = vlaneseq
    %v578 = vshrl.u32 %v577, 7
    %v579 = vsub.s32 4, %v578
    %v580 = vrot.slane %v559, %v579
    %v581 = vlaneseq
    %v582 = vshrl.u32 %v581, 7
    %v583 = vsub.s32 5, %v582
    %v584 = vrot.slane %v559, %v583
    %v585 = vlaneseq
    %v586 = vshrl.u32 %v585, 7
    %v587 = vsub.s32 6, %v586
    %v588 = vrot.slane %v559, %v587
    %v589 = vlaneseq
    %v590 = vshrl.u32 %v589, 7
    %v591 = vsub.s32 7, %v590
    %v592 = vrot.slane %v559, %v591
    %v601 = vsub.f32 %v403, %v564
    %v602 = vsub.f32 %v406, %v564
    %v603 = vsub.f32 %v409, %v568
    %v604 = vsub.f32 %v412, %v568
    %v605 = vsub.f32 %v415, %v572
    %v606 = vsub.f32 %v418, %v572
    %v607 = vsub.f32 %v421, %v576
    %v608 = vsub.f32 %v424, %v576
    %v609 = vsub.f32 %v427, %v580
    %v610 = vsub.f32 %v430, %v580
    %v611 = vsub.f32 %v433, %v584
    %v612 = vsub.f32 %v436, %v584
    %v613 = vsub.f32 %v439, %v588
    %v614 = vsub.f32 %v442, %v588
    %v615 = vsub.f32 %v445, %v592
    %v616 = vsub.f32 %v448, %v592
    %v617 = vmul.f32 %v601, 1.442695
    %v618 = vpow.pop %v617
    %v619 = vmul.f32 %v602, 1.442695
    %v620 = vpow.pop %v619
    %v621 = vmul.f32 %v603, 1.442695
    %v622 = vpow.pop %v621
    %v623 = vmul.f32 %v604, 1.442695
    %v624 = vpow.pop %v623
    %v625 = vmul.f32 %v605, 1.442695
    %v626 = vpow.pop %v625
    %v627 = vmul.f32 %v606, 1.442695
    %v628 = vpow.pop %v627
    %v629 = vmul.f32 %v607, 1.442695
    %v630 = vpow.pop %v629
    %v631 = vmul.f32 %v608, 1.442695
    %v632 = vpow.pop %v631
    %v633 = vmul.f32 %v609, 1.442695
    %v634 = vpow.pop %v633
    %v635 = vmul.f32 %v610, 1.442695
    %v636 = vpow.pop %v635
    %v637 = vmul.f32 %v611, 1.442695
    %v638 = vpow.pop %v637
    %v639 = vmul.f32 %v612, 1.442695
    %v640 = vpow.pop %v639
    %v641 = vmul.f32 %v613, 1.442695
    %v642 = vpow.pop %v641
    %v643 = vmul.f32 %v614, 1.442695
    %v644 = vpow.pop %v643
    %v645 = vmul.f32 %v615, 1.442695
    %v646 = vpow.pop %v645
    %v647 = vmul.f32 %v616, 1.442695
    %v648 = vpow.pop %v647
    %665 = vset.pattern.permute.xlu0 0
    %666 = vperm.xlu0 %665, %v618
    %v667 = vpop.permute.xlu0 %666
    %668 = vset.pattern.permute.xlu0 0
    %669 = vperm.xlu0 %668, %v620
    %v670 = vpop.permute.xlu0 %669
    %671 = vset.pattern.permute.xlu0 0
    %672 = vperm.xlu0 %671, %v622
    %v673 = vpop.permute.xlu0 %672
    %674 = vset.pattern.permute.xlu0 0
    %675 = vperm.xlu0 %674, %v624
    %v676 = vpop.permute.xlu0 %675
    %677 = vset.pattern.permute.xlu0 0
    %678 = vperm.xlu0 %677, %v626
    %v679 = vpop.permute.xlu0 %678
    %680 = vset.pattern.permute.xlu0 0
    %681 = vperm.xlu0 %680, %v628
    %v682 = vpop.permute.xlu0 %681
    %683 = vset.pattern.permute.xlu0 0
    %684 = vperm.xlu0 %683, %v630
    %v685 = vpop.permute.xlu0 %684
    %686 = vset.pattern.permute.xlu0 0
    %687 = vperm.xlu0 %686, %v632
    %v688 = vpop.permute.xlu0 %687
    %689 = vset.pattern.permute.xlu0 0
    %690 = vperm.xlu0 %689, %v634
    %v691 = vpop.permute.xlu0 %690
    %692 = vset.pattern.permute.xlu0 0
    %693 = vperm.xlu0 %692, %v636
    %v694 = vpop.permute.xlu0 %693
    %695 = vset.pattern.permute.xlu0 0
    %696 = vperm.xlu0 %695, %v638
    %v697 = vpop.permute.xlu0 %696
    %698 = vset.pattern.permute.xlu0 0
    %699 = vperm.xlu0 %698, %v640
    %v700 = vpop.permute.xlu0 %699
    %701 = vset.pattern.permute.xlu0 0
    %702 = vperm.xlu0 %701, %v642
    %v703 = vpop.permute.xlu0 %702
    %704 = vset.pattern.permute.xlu0 0
    %705 = vperm.xlu0 %704, %v644
    %v706 = vpop.permute.xlu0 %705
    %707 = vset.pattern.permute.xlu0 0
    %708 = vperm.xlu0 %707, %v646
    %v709 = vpop.permute.xlu0 %708
    %710 = vset.pattern.permute.xlu0 0
    %711 = vperm.xlu0 %710, %v648
    %v712 = vpop.permute.xlu0 %711
    %v713 = vlaneseq
    %v714 = vshrl.u32 %v713, 7
    %v715 = vsub.s32 %v466, %v714
    %v716 = vrot.slane %v667, %v715
    %v717 = vlaneseq
    %v718 = vshrl.u32 %v717, 7
    %v719 = vsub.s32 %v471, %v718
    %v720 = vrot.slane %v670, %v719
    %v721 = vsel %vm476, %v720, %v716
    %v722 = vlaneseq
    %v723 = vshrl.u32 %v722, 7
    %v724 = vsub.s32 %v466, %v723
    %v725 = vrot.slane %v673, %v724
    %v726 = vlaneseq
    %v727 = vshrl.u32 %v726, 7
    %v728 = vsub.s32 %v471, %v727
    %v729 = vrot.slane %v676, %v728
    %v730 = vsel %vm476, %v729, %v725
    %v731 = vlaneseq
    %v732 = vshrl.u32 %v731, 7
    %v733 = vsub.s32 %v466, %v732
    %v734 = vrot.slane %v679, %v733
    %v735 = vlaneseq
    %v736 = vshrl.u32 %v735, 7
    %v737 = vsub.s32 %v471, %v736
    %v738 = vrot.slane %v682, %v737
    %v739 = vsel %vm476, %v738, %v734
    %v740 = vlaneseq
    %v741 = vshrl.u32 %v740, 7
    %v742 = vsub.s32 %v466, %v741
    %v743 = vrot.slane %v685, %v742
    %v744 = vlaneseq
    %v745 = vshrl.u32 %v744, 7
    %v746 = vsub.s32 %v471, %v745
    %v747 = vrot.slane %v688, %v746
    %v748 = vsel %vm476, %v747, %v743
    %v749 = vlaneseq
    %v750 = vshrl.u32 %v749, 7
    %v751 = vsub.s32 %v466, %v750
    %v752 = vrot.slane %v691, %v751
    %v753 = vlaneseq
    %v754 = vshrl.u32 %v753, 7
    %v755 = vsub.s32 %v471, %v754
    %v756 = vrot.slane %v694, %v755
    %v757 = vsel %vm476, %v756, %v752
    %v758 = vlaneseq
    %v759 = vshrl.u32 %v758, 7
    %v760 = vsub.s32 %v466, %v759
    %v761 = vrot.slane %v697, %v760
    %v762 = vlaneseq
    %v763 = vshrl.u32 %v762, 7
    %v764 = vsub.s32 %v471, %v763
    %v765 = vrot.slane %v700, %v764
    %v766 = vsel %vm476, %v765, %v761
    %v767 = vlaneseq
    %v768 = vshrl.u32 %v767, 7
    %v769 = vsub.s32 %v466, %v768
    %v770 = vrot.slane %v703, %v769
    %v771 = vlaneseq
    %v772 = vshrl.u32 %v771, 7
    %v773 = vsub.s32 %v471, %v772
    %v774 = vrot.slane %v706, %v773
    %v775 = vsel %vm476, %v774, %v770
    %v776 = vlaneseq
    %v777 = vshrl.u32 %v776, 7
    %v778 = vsub.s32 %v466, %v777
    %v779 = vrot.slane %v709, %v778
    %v780 = vlaneseq
    %v781 = vshrl.u32 %v780, 7
    %v782 = vsub.s32 %v471, %v781
    %v783 = vrot.slane %v712, %v782
    %v784 = vsel %vm476, %v783, %v779
    %v785 = vsel %vm541, %v730, %v721
    %v786 = vsel %vm543, %v739, %v785
    %v787 = vsel %vm545, %v748, %v786
    %v788 = vsel %vm547, %v757, %v787
    %v789 = vsel %vm549, %v766, %v788
    %v790 = vsel %vm551, %v775, %v789
    %v791 = vsel %vm553, %v784, %v790
    %v793 = vsel %vm556, %v791, 0.0
    %794 = vadd.xlane.f32.xlu0 %v793
    %v795 = vpop.xlane.xlu0 %794
    %v797 = vlaneseq
    %v798 = vshrl.u32 %v797, 7
    %v799 = vsub.s32 0, %v798
    %v800 = vrot.slane %v795, %v799
    %v801 = vlaneseq
    %v802 = vshrl.u32 %v801, 7
    %v803 = vsub.s32 1, %v802
    %v804 = vrot.slane %v795, %v803
    %v805 = vlaneseq
    %v806 = vshrl.u32 %v805, 7
    %v807 = vsub.s32 2, %v806
    %v808 = vrot.slane %v795, %v807
    %v809 = vlaneseq
    %v810 = vshrl.u32 %v809, 7
    %v811 = vsub.s32 3, %v810
    %v812 = vrot.slane %v795, %v811
    %v813 = vlaneseq
    %v814 = vshrl.u32 %v813, 7
    %v815 = vsub.s32 4, %v814
    %v816 = vrot.slane %v795, %v815
    %v817 = vlaneseq
    %v818 = vshrl.u32 %v817, 7
    %v819 = vsub.s32 5, %v818
    %v820 = vrot.slane %v795, %v819
    %v821 = vlaneseq
    %v822 = vshrl.u32 %v821, 7
    %v823 = vsub.s32 6, %v822
    %v824 = vrot.slane %v795, %v823
    %v825 = vlaneseq
    %v826 = vshrl.u32 %v825, 7
    %v827 = vsub.s32 7, %v826
    %v828 = vrot.slane %v795, %v827
    %v837 = vrcp.pop %v800
    %v838 = vmul.f32 %v618, %v837
    %v839 = vmul.f32 %v620, %v837
    %v840 = vrcp.pop %v804
    %v841 = vmul.f32 %v622, %v840
    %v842 = vmul.f32 %v624, %v840
    %v843 = vrcp.pop %v808
    %v844 = vmul.f32 %v626, %v843
    %v845 = vmul.f32 %v628, %v843
    %v846 = vrcp.pop %v812
    %v847 = vmul.f32 %v630, %v846
    %v848 = vmul.f32 %v632, %v846
    %v849 = vrcp.pop %v816
    %v850 = vmul.f32 %v634, %v849
    %v851 = vmul.f32 %v636, %v849
    %v852 = vrcp.pop %v820
    %v853 = vmul.f32 %v638, %v852
    %v854 = vmul.f32 %v640, %v852
    %v855 = vrcp.pop %v824
    %v856 = vmul.f32 %v642, %v855
    %v857 = vmul.f32 %v644, %v855
    %v858 = vrcp.pop %v828
    %v859 = vmul.f32 %v646, %v858
    %v860 = vmul.f32 %v648, %v858
    %877 = vset.pattern.permute.xlu0 0
    %878 = vperm.xlu0 %877, %v838
    %v879 = vpop.permute.xlu0 %878
    %880 = vset.pattern.permute.xlu0 0
    %881 = vperm.xlu0 %880, %v839
    %v882 = vpop.permute.xlu0 %881
    %883 = vset.pattern.permute.xlu0 0
    %884 = vperm.xlu0 %883, %v841
    %v885 = vpop.permute.xlu0 %884
    %886 = vset.pattern.permute.xlu0 0
    %887 = vperm.xlu0 %886, %v842
    %v888 = vpop.permute.xlu0 %887
    %889 = vset.pattern.permute.xlu0 0
    %890 = vperm.xlu0 %889, %v844
    %v891 = vpop.permute.xlu0 %890
    %892 = vset.pattern.permute.xlu0 0
    %893 = vperm.xlu0 %892, %v845
    %v894 = vpop.permute.xlu0 %893
    %895 = vset.pattern.permute.xlu0 0
    %896 = vperm.xlu0 %895, %v847
    %v897 = vpop.permute.xlu0 %896
    %898 = vset.pattern.permute.xlu0 0
    %899 = vperm.xlu0 %898, %v848
    %v900 = vpop.permute.xlu0 %899
    %901 = vset.pattern.permute.xlu0 0
    %902 = vperm.xlu0 %901, %v850
    %v903 = vpop.permute.xlu0 %902
    %904 = vset.pattern.permute.xlu0 0
    %905 = vperm.xlu0 %904, %v851
    %v906 = vpop.permute.xlu0 %905
    %907 = vset.pattern.permute.xlu0 0
    %908 = vperm.xlu0 %907, %v853
    %v909 = vpop.permute.xlu0 %908
    %910 = vset.pattern.permute.xlu0 0
    %911 = vperm.xlu0 %910, %v854
    %v912 = vpop.permute.xlu0 %911
    %913 = vset.pattern.permute.xlu0 0
    %914 = vperm.xlu0 %913, %v856
    %v915 = vpop.permute.xlu0 %914
    %916 = vset.pattern.permute.xlu0 0
    %917 = vperm.xlu0 %916, %v857
    %v918 = vpop.permute.xlu0 %917
    %919 = vset.pattern.permute.xlu0 0
    %920 = vperm.xlu0 %919, %v859
    %v921 = vpop.permute.xlu0 %920
    %922 = vset.pattern.permute.xlu0 0
    %923 = vperm.xlu0 %922, %v860
    %v924 = vpop.permute.xlu0 %923
    %v925 = vlaneseq
    %v926 = vshrl.u32 %v925, 7
    %v927 = vsub.s32 %v466, %v926
    %v928 = vrot.slane %v879, %v927
    %v929 = vlaneseq
    %v930 = vshrl.u32 %v929, 7
    %v931 = vsub.s32 %v471, %v930
    %v932 = vrot.slane %v882, %v931
    %v933 = vsel %vm476, %v932, %v928
    %v934 = vlaneseq
    %v935 = vshrl.u32 %v934, 7
    %v936 = vsub.s32 %v466, %v935
    %v937 = vrot.slane %v885, %v936
    %v938 = vlaneseq
    %v939 = vshrl.u32 %v938, 7
    %v940 = vsub.s32 %v471, %v939
    %v941 = vrot.slane %v888, %v940
    %v942 = vsel %vm476, %v941, %v937
    %v943 = vlaneseq
    %v944 = vshrl.u32 %v943, 7
    %v945 = vsub.s32 %v466, %v944
    %v946 = vrot.slane %v891, %v945
    %v947 = vlaneseq
    %v948 = vshrl.u32 %v947, 7
    %v949 = vsub.s32 %v471, %v948
    %v950 = vrot.slane %v894, %v949
    %v951 = vsel %vm476, %v950, %v946
    %v952 = vlaneseq
    %v953 = vshrl.u32 %v952, 7
    %v954 = vsub.s32 %v466, %v953
    %v955 = vrot.slane %v897, %v954
    %v956 = vlaneseq
    %v957 = vshrl.u32 %v956, 7
    %v958 = vsub.s32 %v471, %v957
    %v959 = vrot.slane %v900, %v958
    %v960 = vsel %vm476, %v959, %v955
    %v961 = vlaneseq
    %v962 = vshrl.u32 %v961, 7
    %v963 = vsub.s32 %v466, %v962
    %v964 = vrot.slane %v903, %v963
    %v965 = vlaneseq
    %v966 = vshrl.u32 %v965, 7
    %v967 = vsub.s32 %v471, %v966
    %v968 = vrot.slane %v906, %v967
    %v969 = vsel %vm476, %v968, %v964
    %v970 = vlaneseq
    %v971 = vshrl.u32 %v970, 7
    %v972 = vsub.s32 %v466, %v971
    %v973 = vrot.slane %v909, %v972
    %v974 = vlaneseq
    %v975 = vshrl.u32 %v974, 7
    %v976 = vsub.s32 %v471, %v975
    %v977 = vrot.slane %v912, %v976
    %v978 = vsel %vm476, %v977, %v973
    %v979 = vlaneseq
    %v980 = vshrl.u32 %v979, 7
    %v981 = vsub.s32 %v466, %v980
    %v982 = vrot.slane %v915, %v981
    %v983 = vlaneseq
    %v984 = vshrl.u32 %v983, 7
    %v985 = vsub.s32 %v471, %v984
    %v986 = vrot.slane %v918, %v985
    %v987 = vsel %vm476, %v986, %v982
    %v988 = vlaneseq
    %v989 = vshrl.u32 %v988, 7
    %v990 = vsub.s32 %v466, %v989
    %v991 = vrot.slane %v921, %v990
    %v992 = vlaneseq
    %v993 = vshrl.u32 %v992, 7
    %v994 = vsub.s32 %v471, %v993
    %v995 = vrot.slane %v924, %v994
    %v996 = vsel %vm476, %v995, %v991
    %v997 = vsel %vm541, %v942, %v933
    %v998 = vsel %vm543, %v951, %v997
    %v999 = vsel %vm545, %v960, %v998
    %v1000 = vsel %vm547, %v969, %v999
    %v1001 = vsel %vm549, %v978, %v1000
    %v1002 = vsel %vm551, %v987, %v1001
    %v1003 = vsel %vm553, %v996, %v1002
    %1005 = vst.msk [vmem:[#allocation9] sm:$0xff] %vm556, %v1003
    %v1006 = vunpack.c.l.bf16 %v61
    %v1007 = vunpack.c.l.bf16 %v62
    %v1008 = vunpack.c.l.bf16 %v63
    %v1009 = vunpack.c.l.bf16 %v64
    %v1010 = vunpack.c.l.bf16 %v65
    %v1011 = vunpack.c.l.bf16 %v66
    %v1012 = vunpack.c.l.bf16 %v67
    %v1013 = vunpack.c.l.bf16 %v68
    %v1014 = vunpack.c.l.bf16 %v69
    %v1015 = vunpack.c.l.bf16 %v70
    %v1016 = vunpack.c.l.bf16 %v71
    %v1017 = vunpack.c.l.bf16 %v72
    %v1018 = vunpack.c.l.bf16 %v73
    %v1019 = vunpack.c.l.bf16 %v74
    %v1020 = vunpack.c.l.bf16 %v75
    %v1021 = vunpack.c.l.bf16 %v76
    %v1038 = vmul.f32 %v1006, %v879
    %v1039 = vmul.f32 %v1007, %v882
    %v1040 = vmul.f32 %v1008, %v885
    %v1041 = vmul.f32 %v1009, %v888
    %v1042 = vmul.f32 %v1010, %v891
    %v1043 = vmul.f32 %v1011, %v894
    %v1044 = vmul.f32 %v1012, %v897
    %v1045 = vmul.f32 %v1013, %v900
    %v1046 = vmul.f32 %v1014, %v903
    %v1047 = vmul.f32 %v1015, %v906
    %v1048 = vmul.f32 %v1016, %v909
    %v1049 = vmul.f32 %v1017, %v912
    %v1050 = vmul.f32 %v1018, %v915
    %v1051 = vmul.f32 %v1019, %v918
    %v1052 = vmul.f32 %v1020, %v921
    %v1053 = vmul.f32 %v1021, %v924
    %v1054 = vsel %vm134, %v1038, 0.0
    %v1055 = vsel %vm134, %v1039, 0.0
    %v1056 = vadd.f32 %v1054, %v1055
    %v1057 = vrot.slane %v1056, 4
    %v1058 = vadd.f32 %v1056, %v1057
    %v1059 = vrot.slane %v1058, 2
    %v1060 = vadd.f32 %v1058, %v1059
    %v1061 = vrot.slane %v1060, 1
    %v1062 = vadd.f32 %v1060, %v1061
    %v1063 = vsel %vm134, %v1040, 0.0
    %v1064 = vsel %vm134, %v1041, 0.0
    %v1065 = vadd.f32 %v1063, %v1064
    %v1066 = vrot.slane %v1065, 4
    %v1067 = vadd.f32 %v1065, %v1066
    %v1068 = vrot.slane %v1067, 2
    %v1069 = vadd.f32 %v1067, %v1068
    %v1070 = vrot.slane %v1069, 1
    %v1071 = vadd.f32 %v1069, %v1070
    %v1072 = vsel %vm134, %v1042, 0.0
    %v1073 = vsel %vm134, %v1043, 0.0
    %v1074 = vadd.f32 %v1072, %v1073
    %v1075 = vrot.slane %v1074, 4
    %v1076 = vadd.f32 %v1074, %v1075
    %v1077 = vrot.slane %v1076, 2
    %v1078 = vadd.f32 %v1076, %v1077
    %v1079 = vrot.slane %v1078, 1
    %v1080 = vadd.f32 %v1078, %v1079
    %v1081 = vsel %vm134, %v1044, 0.0
    %v1082 = vsel %vm134, %v1045, 0.0
    %v1083 = vadd.f32 %v1081, %v1082
    %v1084 = vrot.slane %v1083, 4
    %v1085 = vadd.f32 %v1083, %v1084
    %v1086 = vrot.slane %v1085, 2
    %v1087 = vadd.f32 %v1085, %v1086
    %v1088 = vrot.slane %v1087, 1
    %v1089 = vadd.f32 %v1087, %v1088
    %v1090 = vsel %vm134, %v1046, 0.0
    %v1091 = vsel %vm134, %v1047, 0.0
    %v1092 = vadd.f32 %v1090, %v1091
    %v1093 = vrot.slane %v1092, 4
    %v1094 = vadd.f32 %v1092, %v1093
    %v1095 = vrot.slane %v1094, 2
    %v1096 = vadd.f32 %v1094, %v1095
    %v1097 = vrot.slane %v1096, 1
    %v1098 = vadd.f32 %v1096, %v1097
    %v1099 = vsel %vm134, %v1048, 0.0
    %v1100 = vsel %vm134, %v1049, 0.0
    %v1101 = vadd.f32 %v1099, %v1100
    %v1102 = vrot.slane %v1101, 4
    %v1103 = vadd.f32 %v1101, %v1102
    %v1104 = vrot.slane %v1103, 2
    %v1105 = vadd.f32 %v1103, %v1104
    %v1106 = vrot.slane %v1105, 1
    %v1107 = vadd.f32 %v1105, %v1106
    %v1108 = vsel %vm134, %v1050, 0.0
    %v1109 = vsel %vm134, %v1051, 0.0
    %v1110 = vadd.f32 %v1108, %v1109
    %v1111 = vrot.slane %v1110, 4
    %v1112 = vadd.f32 %v1110, %v1111
    %v1113 = vrot.slane %v1112, 2
    %v1114 = vadd.f32 %v1112, %v1113
    %v1115 = vrot.slane %v1114, 1
    %v1116 = vadd.f32 %v1114, %v1115
    %v1117 = vsel %vm134, %v1052, 0.0
    %v1118 = vsel %vm134, %v1053, 0.0
    %v1119 = vadd.f32 %v1117, %v1118
    %v1120 = vrot.slane %v1119, 4
    %v1121 = vadd.f32 %v1119, %v1120
    %v1122 = vrot.slane %v1121, 2
    %v1123 = vadd.f32 %v1121, %v1122
    %v1124 = vrot.slane %v1123, 1
    %v1125 = vadd.f32 %v1123, %v1124
    %v1134 = vsel %vm541, %v1071, %v1062
    %v1135 = vsel %vm543, %v1080, %v1134
    %v1136 = vsel %vm545, %v1089, %v1135
    %v1137 = vsel %vm547, %v1098, %v1136
    %v1138 = vsel %vm549, %v1107, %v1137
    %v1139 = vsel %vm551, %v1116, %v1138
    %v1140 = vsel %vm553, %v1125, %v1139
    %1142 = vst.msk [vmem:[#allocation8] sm:$0xff] %vm134, %v1140
    // Predicated region
    $region30: #{tpu_custom_call.1} parent=1 // pred_check
      _
    $region31: #{tpu_custom_call.1} parent=1 // pred_check_branch
      %1144 = sbr.rel (0) target = $region33
    $region32: #{tpu_custom_call.1} parent=1 // pred_region
      %s1146 = ssub.s32 128, 128
      %1147 = vsyncadd [#allocation4], %s1146
      %s1149 = sshll.u32 [#allocation8], 4
      %s1150 = int_to_ptr.vmem [resolvable:$true] %s1149
      %1152 = dma.vmem_to_hbm [thread:$0]  %s1150, 128, %s4, [#allocation4]
    $region33: #{tpu_custom_call.1} parent=1 // pred_fallthru
      _
    // Predicated region
    $region34: #{tpu_custom_call.1} parent=1 // pred_check
      _
    $region35: #{tpu_custom_call.1} parent=1 // pred_check_branch
      %1154 = sbr.rel (0) target = $region37
    $region36: #{tpu_custom_call.1} parent=1 // pred_region
      %s1156 = ssub.s32 128, 128
      %1157 = vsyncadd [#allocation10], %s1156
      %s1159 = sshll.u32 [#allocation9], 4
      %s1160 = int_to_ptr.vmem [resolvable:$true] %s1159
      %1162 = dma.vmem_to_hbm [thread:$0]  %s1160, 128, %s5, [#allocation10]
    $region37: #{tpu_custom_call.1} parent=1 // pred_fallthru
      _
    // Predicated region
    $region38: #{tpu_custom_call.1} parent=1 // pred_check
      _
    $region39: #{tpu_custom_call.1} parent=1 // pred_check_branch
      %1164 = sbr.rel (0) target = $region41
    $region40: #{tpu_custom_call.1} parent=1 // pred_region
      %1165 = dma.done [#allocation4], 128
    $region41: #{tpu_custom_call.1} parent=1 // pred_fallthru
      _
    // Predicated region
    $region42: #{tpu_custom_call.1} parent=1 // pred_check
      _
    $region43: #{tpu_custom_call.1} parent=1 // pred_check_branch
      %1167 = sbr.rel (0) target = $region45
    $region44: #{tpu_custom_call.1} parent=1 // pred_region
      %1168 = dma.done [#allocation10], 128
    $region45: #{tpu_custom_call.1} parent=1 // pred_fallthru
      _
    %1169 = vsyncpa [#allocation3], 1
    %1170 = vsyncpa [#allocation6], 1
    %1171 = vsyncpa [#allocation4], 1
    %1172 = vsyncpa [#allocation10], 1

</llo_original>
